<compile_context>
chip_gen: v7x
topology: tpu7x:2x2x1
jax: 0.10.0
libtpu: 0.0.40
codegen_flags: <defaults>
</compile_context>

<pallas_src>
import math

import jax
import jax.numpy as jnp
from jax.experimental import pallas as pl
from jax.experimental.pallas import tpu as pltpu

# ----------------------------- static config (args / scheme) -----------------------------
B = 2                          # batch * n_agents, flattened
OBS_DIM = 10                   # fixed-state raw feature dim
N_ALLIES, ALLY_FEAT = 4, 8     # variable group "ally"
N_ENEMIES, ENEMY_FEAT = 5, 6   # variable group "enemy"
H = 32                         # attn_hidden_dim == rnn_hidden_dim
N_LAYERS = 2                   # args.attn_n_layers
N_HEADS = 4                    # args.attn_n_heads
HEAD_DIM = H // N_HEADS
N_ACTIONS = 7                  # args.n_actions
N_VAR = 2                      # number of variable-entity groups (sorted: ally, enemy)
USE_RNN = True                 # args.use_rnn

MAX_FEAT = max(ALLY_FEAT, ENEMY_FEAT)
N_TOTAL = N_ALLIES + N_ENEMIES
OUT_LANES = 128                # lane-dense packed output row: [q | 0 | h | 0]
SCALE = 1.0 / math.sqrt(HEAD_DIM)

assert N_ACTIONS <= H and 2 * H <= OUT_LANES


def _round_up(x, m):
    return -(-x // m) * m


# -------------------- weight-slab layout (computed once, shared by wrapper + kernel) ------
# bf16 matrix slab: every matrix starts at lane 0 and a row offset that is a multiple
# of 16 (bf16 sublane packing), so in-kernel static slices are tile-aligned.
_MAT_SHAPES = {
    "w_fix": (OBS_DIM, H),             # fixed-state embedding
    "w_emb": (MAX_FEAT, 2 * H),        # [ally | enemy] entity embeddings (feature-padded)
    "wq":    (N_LAYERS * H, H),        # per-layer query proj (stacked on rows)
    "wkv":   (N_LAYERS * H, 4 * H),    # per-layer [Ka|Va|Ke|Ve] fused, 128 output lanes
    "wo":    (N_LAYERS * H, H),        # per-layer output proj
    "w1":    (H, H),                   # fc1
    "w_gi":  (H, 3 * H),               # GRU input weights  [r|z|n]
    "w_gh":  (H, 3 * H),               # GRU hidden weights [r|z|n]
    "sel":   (H, N_HEADS),             # one-hot head selector (lane -> head)
    "selt":  (N_HEADS, H),             # head expander (head -> lanes)
}
_MAT_OFF = {}
_r = 0
for _name, (_rows, _cols) in _MAT_SHAPES.items():
    _MAT_OFF[_name] = _r
    _r += _round_up(_rows, 16)
MAT_SLAB_ROWS = _round_up(_r, 16)

# f32 slab: bias rows + the f32 output-head matrix [w2 | 0 | I_H | 0].
_VEC_SPECS = [("b_fix", 1, H), ("b_emb", 1, 2 * H), ("bo", N_LAYERS, H),
              ("b1", 1, H), ("b_gi", 1, 3 * H), ("b_gh", 1, 3 * H),
              ("b_out", 1, OUT_LANES)]
_VEC_OFF = {}
_r = 0
for _name, _nrows, _cols in _VEC_SPECS:
    _VEC_OFF[_name] = (_r, _nrows, _cols)
    _r += _nrows
_WOUT_ROW = _round_up(_r, 8)
VEC_SLAB_ROWS = _WOUT_ROW + H


# ----------------------------------- the Pallas kernel -----------------------------------
def agent_kernel(obs_ref, ents_ref, h0_ref, mat_ref, vec_ref, out_ref, h_carry):
    f32 = jnp.float32
    bf16 = jnp.bfloat16
    bb = obs_ref.shape[1]                       # static batch-block size (multiple of 8)

    def mat(name, layer=None):
        rows, cols = _MAT_SHAPES[name]
        r0 = _MAT_OFF[name]
        if layer is not None:
            rows = rows // N_LAYERS
            r0 = r0 + layer * rows
        return mat_ref[r0:r0 + rows, 0:cols]    # bf16 view, static slice

    def vec(name, layer=0):
        r0, _, cols = _VEC_OFF[name]
        r0 = r0 + layer
        return vec_ref[r0:r0 + 1, 0:cols]       # (1, cols) f32 bias row

    def dot_bf(a, w):                           # MXU: bf16 operands, f32 accumulation
        return jnp.dot(a.astype(bf16), w, preferred_element_type=f32)

    def dot3_bf(a3, w):                         # (E, bb, K) @ (K, N) -> (E, bb, N)
        e, b, k = a3.shape                      # bb multiple of 8 -> tile-aligned reshape
        y = dot_bf(a3.reshape(e * b, k), w)
        return y.reshape(e, b, y.shape[-1])

    # ---- hidden-state carry over the (sequential, "arbitrary") time grid axis ----
    @pl.when(pl.program_id(1) == 0)
    def _():
        h_carry[...] = h0_ref[...]

    obs = obs_ref[0]                            # (bb, OBS_DIM) f32
    ents = ents_ref[0]                          # (N_TOTAL, bb, MAX_FEAT) f32
    h_prev = h_carry[...]                       # (bb, H) f32

    ent_id = jax.lax.broadcasted_iota(jnp.int32, (N_TOTAL, bb, 1), 0)
    is_ally = ent_id < N_ALLIES                 # group-select mask (cheap VPU select)

    # ---------------- InputBuilder: one embedding matmul for all entities ----------------
    fixed = dot_bf(obs, mat("w_fix")) + vec("b_fix")                 # (bb, H)
    emb2 = dot3_bf(ents, mat("w_emb")) + vec("b_emb")                # (NT, bb, 2H)
    emb = jnp.where(is_ally, emb2[..., :H], emb2[..., H:])           # (NT, bb, H)

    # ---------------- MultiLayerAttention (one matmul set per layer, both groups) --------
    x = fixed
    for l in range(N_LAYERS):
        q = dot_bf(x, mat("wq", l)) * SCALE                          # (bb, H)
        kv = dot3_bf(emb, mat("wkv", l))                             # (NT, bb, 4H) 128 lanes
        k = jnp.where(is_ally, kv[..., 0:H], kv[..., 2 * H:3 * H])   # (NT, bb, H)
        v = jnp.where(is_ally, kv[..., H:2 * H], kv[..., 3 * H:])    # (NT, bb, H)
        s = dot3_bf(q[None, :, :] * k, mat("sel"))                   # (NT, bb, NH)
        m = jnp.max(s, axis=0, keepdims=True)                        # shared shift is valid
        ex = jnp.exp(s - m)                                          # one exp per layer
        den_a = jnp.sum(ex[:N_ALLIES], axis=0)                       # per-group softmax denom
        den_e = jnp.sum(ex[N_ALLIES:], axis=0)
        inv = jnp.where(is_ally, (1.0 / den_a)[None], (1.0 / den_e)[None])
        p = dot3_bf(ex * inv, mat("selt"))                           # (NT, bb, H) expand heads
        heads = jnp.sum(p * v, axis=0)                               # sum over entities+groups
        x = x + dot_bf(heads, mat("wo", l)) + vec("bo", l)           # residual

    # ---------------- x1 = relu(fc1(relu(attn_x))) ----------------
    x1 = jnp.maximum(dot_bf(jnp.maximum(x, 0.0), mat("w1")) + vec("b1"), 0.0)

    # ---------------- GRUCell (r, z, n) via two accumulated matmuls (no concat) ----------
    if USE_RNN:
        gi = dot_bf(x1, mat("w_gi")) + vec("b_gi")                   # (bb, 3H)
        gh = dot_bf(h_prev, mat("w_gh")) + vec("b_gh")               # (bb, 3H)
        r = jax.nn.sigmoid(gi[:, 0:H] + gh[:, 0:H])
        z = jax.nn.sigmoid(gi[:, H:2 * H] + gh[:, H:2 * H])
        n = jnp.tanh(gi[:, 2 * H:] + r * gh[:, 2 * H:])
        h_new = (1.0 - z) * n + z * h_prev
    else:
        h_new = x1

    h_carry[...] = h_new

    # ---------------- fc2 + [q | 0 | h | 0] 128-lane slab by construction (f32) ----------
    w_out = vec_ref[_WOUT_ROW:_WOUT_ROW + H, :]                      # (H, 128) f32
    out_ref[0] = jnp.dot(h_new, w_out, preferred_element_type=f32) + vec("b_out")


# ----------------------------------- weight packing -----------------------------------
def _pack_params(params):
    (w_fix, b_fix, w_ally, b_ally, w_en, b_en,
     wq, wk, wv, wo, bo, w1, b1,
     w_ih, b_ih, w_hh, b_hh, w2, b2) = params
    f32 = jnp.float32

    # Fused entity embedding: [ally | enemy], enemy feature rows zero-padded to MAX_FEAT.
    w_ally_p = jnp.zeros((MAX_FEAT, H), f32).at[:ALLY_FEAT].set(w_ally)
    w_en_p = jnp.zeros((MAX_FEAT, H), f32).at[:ENEMY_FEAT].set(w_en)
    w_emb = jnp.concatenate([w_ally_p, w_en_p], axis=1)              # (MAX_FEAT, 2H)
    b_emb = jnp.concatenate([b_ally, b_en], axis=1)                  # (1, 2H)

    # Per-layer fused KV weight spanning both groups: [Ka|Va|Ke|Ve] -> 128 output lanes.
    wkv = jnp.concatenate([wk[:, 0], wv[:, 0], wk[:, 1], wv[:, 1]], axis=-1)  # (L, H, 4H)
    wkv = wkv.reshape(N_LAYERS * H, 4 * H)
    wq_r = wq.reshape(N_LAYERS * H, H)
    wo_r = wo.reshape(N_LAYERS * H, H)

    # One-hot head selector / expander (exact in bf16; score scale applied to q in-kernel).
    head_id = jnp.arange(H, dtype=jnp.int32) // HEAD_DIM
    one_hot = jax.nn.one_hot(head_id, N_HEADS, dtype=f32)            # (H, NH)
    sel, selt = one_hot, one_hot.T

    # f32 output head: [w2 | 0 | I_H | 0] so one matmul emits the packed [q|0|h|0] row.
    w_out = jnp.zeros((H, OUT_LANES), f32)
    w_out = w_out.at[:, :N_ACTIONS].set(w2)
    w_out = w_out.at[:, H:2 * H].set(jnp.eye(H, dtype=f32))
    b_out = jnp.zeros((1, OUT_LANES), f32).at[:, :N_ACTIONS].set(b2)

    mats = {"w_fix": w_fix, "w_emb": w_emb, "wq": wq_r, "wkv": wkv, "wo": wo_r,
            "w1": w1, "w_gi": w_ih, "w_gh": w_hh, "sel": sel, "selt": selt}
    mat_slab = jnp.zeros((MAT_SLAB_ROWS, OUT_LANES), jnp.bfloat16)
    for name, w in mats.items():
        r0 = _MAT_OFF[name]
        rows, cols = _MAT_SHAPES[name]
        mat_slab = mat_slab.at[r0:r0 + rows, 0:cols].set(w.astype(jnp.bfloat16))

    vecs = {"b_fix": b_fix, "b_emb": b_emb, "bo": bo.reshape(N_LAYERS, H), "b1": b1,
            "b_gi": b_ih, "b_gh": b_hh, "b_out": b_out}
    vec_slab = jnp.zeros((VEC_SLAB_ROWS, OUT_LANES), f32)
    for name, v in vecs.items():
        r0, nrows, cols = _VEC_OFF[name]
        vec_slab = vec_slab.at[r0:r0 + nrows, 0:cols].set(v.reshape(nrows, cols))
    vec_slab = vec_slab.at[_WOUT_ROW:_WOUT_ROW + H, :].set(w_out)
    return mat_slab, vec_slab


# ----------------------------------- wrappers -----------------------------------
@jax.jit
def multi_att_rnn_agent_rollout(obs_seq, ally_seq, enemy_seq, h0, params):
    """T-step rollout in ONE pallas_call. Returns (q_seq (T,B,A), h_seq (T,B,H))."""
    f32 = jnp.float32
    T, B_ = obs_seq.shape[:2]
    block_b = min(256, _round_up(B_, 8))
    Bp = _round_up(B_, block_b)

    mat_slab, vec_slab = _pack_params(params)

    # Entity-major, feature-padded, group-stacked variable states: (T, NT, Bp, MAX_FEAT).
    ally_t = jnp.transpose(ally_seq.astype(f32), (0, 2, 1, 3))
    enemy_t = jnp.transpose(enemy_seq.astype(f32), (0, 2, 1, 3))
    ally_t = jnp.pad(ally_t, ((0, 0), (0, 0), (0, Bp - B_), (0, MAX_FEAT - ALLY_FEAT)))
    enemy_t = jnp.pad(enemy_t, ((0, 0), (0, 0), (0, Bp - B_), (0, MAX_FEAT - ENEMY_FEAT)))
    ents = jnp.concatenate([ally_t, enemy_t], axis=1)

    obs_p = jnp.pad(obs_seq.astype(f32), ((0, 0), (0, Bp - B_), (0, 0)))
    h0_p = jnp.pad(h0.astype(f32).reshape(-1, H), ((0, Bp - B_), (0, 0)))

    out = pl.pallas_call(
        agent_kernel,
        out_shape=jax.ShapeDtypeStruct((T, Bp, OUT_LANES), f32),
        grid=(Bp // block_b, T),
        in_specs=[
            pl.BlockSpec((1, block_b, OBS_DIM), lambda i, t: (t, i, 0)),
            pl.BlockSpec((1, N_TOTAL, block_b, MAX_FEAT), lambda i, t: (t, 0, i, 0)),
            pl.BlockSpec((block_b, H), lambda i, t: (i, 0)),
            pl.BlockSpec((MAT_SLAB_ROWS, OUT_LANES), lambda i, t: (0, 0)),
            pl.BlockSpec((VEC_SLAB_ROWS, OUT_LANES), lambda i, t: (0, 0)),
        ],
        out_specs=pl.BlockSpec((1, block_b, OUT_LANES), lambda i, t: (t, i, 0)),
        scratch_shapes=[pltpu.VMEM((block_b, H), f32)],
        compiler_params=pltpu.CompilerParams(
            dimension_semantics=("parallel", "arbitrary")),
    )(obs_p, ents, h0_p, mat_slab, vec_slab)

    q_seq = out[:, :B_, :N_ACTIONS]
    h_seq = out[:, :B_, H:2 * H]
    return q_seq, h_seq


def multi_att_rnn_agent(obs, ally, enemy, h_in, params):
    """Single-step forward matching MULTIATTRNNAgent.forward: returns (q, h)."""
    q_seq, h_seq = multi_att_rnn_agent_rollout(
        obs[None], ally[None], enemy[None], h_in, params)
    return q_seq[0], h_seq[0]


# ----------------------------------- deterministic params -----------------------------------
def init_params(key):
    keys = list(jax.random.split(key, 16))

    def lin(k, fin, fout):
        kw, kb = jax.random.split(k)
        s = 1.0 / math.sqrt(fin)
        w = jax.random.uniform(kw, (fin, fout), jnp.float32, -s, s)
        b = jax.random.uniform(kb, (1, fout), jnp.float32, -s, s)
        return w, b

    w_fix, b_fix = lin(keys[0], OBS_DIM, H)
    w_ally, b_ally = lin(keys[1], ALLY_FEAT, H)
    w_en, b_en = lin(keys[2], ENEMY_FEAT, H)

    s = 1.0 / math.sqrt(H)
    wq = jax.random.uniform(keys[3], (N_LAYERS, H, H), jnp.float32, -s, s)
    wk = jax.random.uniform(keys[4], (N_LAYERS, N_VAR, H, H), jnp.float32, -s, s)
    wv = jax.random.uniform(keys[5], (N_LAYERS, N_VAR, H, H), jnp.float32, -s, s)
    wo = jax.random.uniform(keys[6], (N_LAYERS, H, H), jnp.float32, -s, s)
    bo = jnp.zeros((N_LAYERS, 1, H), jnp.float32)

    w1, b1 = lin(keys[7], H, H)
    w_ih, b_ih = lin(keys[8], H, 3 * H)   # columns: [r | z | n]
    w_hh, b_hh = lin(keys[9], H, 3 * H)
    w2, b2 = lin(keys[10], H, N_ACTIONS)

    return (w_fix, b_fix, w_ally, b_ally, w_en, b_en,
            wq, wk, wv, wo, bo,
            w1, b1,
            w_ih, b_ih, w_hh, b_hh,
            w2, b2)


if __name__ == "__main__":
    key = jax.random.PRNGKey(0)
    k_obs, k_ally, k_enemy, k_params = jax.random.split(key, 4)

    T = 8
    obs_seq = jax.random.normal(k_obs, (T, B, OBS_DIM), jnp.float32)
    ally_seq = jax.random.normal(k_ally, (T, B, N_ALLIES, ALLY_FEAT), jnp.float32)
    enemy_seq = jax.random.normal(k_enemy, (T, B, N_ENEMIES, ENEMY_FEAT), jnp.float32)
    h0 = jnp.zeros((B, H), jnp.float32)          # init_hidden() is zeros

    params = init_params(k_params)

    # Rolled-out T-step forward: one pallas_call, h carried in VMEM scratch.
    q_seq, h_seq = multi_att_rnn_agent_rollout(obs_seq, ally_seq, enemy_seq, h0, params)
    jax.block_until_ready((q_seq, h_seq))
    assert q_seq.shape == (T, B, N_ACTIONS) and h_seq.shape == (T, B, H)
    assert bool(jnp.all(jnp.isfinite(q_seq))) and bool(jnp.all(jnp.isfinite(h_seq)))

    # Single-step forward (module.forward semantics) must equal step 0 of the rollout.
    q0, h0_out = multi_att_rnn_agent(obs_seq[0], ally_seq[0], enemy_seq[0], h0, params)
    jax.block_until_ready((q0, h0_out))
    assert q0.shape == (B, N_ACTIONS) and h0_out.shape == (B, H)
    assert bool(jnp.allclose(q0, q_seq[0], atol=1e-5, rtol=1e-5))
    assert bool(jnp.allclose(h0_out, h_seq[0], atol=1e-5, rtol=1e-5))

    print("KERNEL_OK")
</pallas_src>

<mosaic_0001>
module attributes {stable_mosaic.version = 11 : i64} {
  func.func @agent_kernel(%arg0: i32, %arg1: i32, %arg2: memref<1x8x10xf32, #tpu.memory_space<vmem>>, %arg3: memref<1x9x8x8xf32, #tpu.memory_space<vmem>>, %arg4: memref<8x32xf32, #tpu.memory_space<vmem>>, %arg5: memref<368x128xbf16, #tpu.memory_space<vmem>>, %arg6: memref<40x128xf32, #tpu.memory_space<vmem>>, %arg7: memref<1x8x128xf32, #tpu.memory_space<vmem>>, %arg8: memref<8x32xf32, #tpu.memory_space<vmem>>) attributes {dimension_semantics = [#tpu.dimension_semantics<parallel>, #tpu.dimension_semantics<arbitrary>], iteration_bounds = array<i64: 1, 8>, scalar_prefetch = 0 : i64, scratch_operands = 1 : i64, tpu.core_type = #tpu.core_type<tc>, window_params = [{transform_indices = @transform_0, window_bounds = array<i64: 1, 8, 10>}, {transform_indices = @transform_1, window_bounds = array<i64: 1, 9, 8, 8>}, {transform_indices = @transform_2, window_bounds = array<i64: 8, 32>}, {pipeline_mode = #tpu.pipeline_mode<synchronous>, transform_indices = @transform_3, window_bounds = array<i64: 368, 128>}, {pipeline_mode = #tpu.pipeline_mode<synchronous>, transform_indices = @transform_4, window_bounds = array<i64: 40, 128>}, {transform_indices = @transform_5, window_bounds = array<i64: 1, 8, 128>}]} {
    %c0_i32 = arith.constant 0 : i32
    %0 = arith.cmpi eq, %arg1, %c0_i32 : i32
    %1 = arith.extui %0 : i1 to i32
    %c0_i32_0 = arith.constant 0 : i32
    %2 = arith.cmpi ne, %1, %c0_i32_0 : i32
    scf.if %2 {
      %c0_76 = arith.constant 0 : index
      %c0_77 = arith.constant 0 : index
      %218 = vector.load %arg4[%c0_76, %c0_77] : memref<8x32xf32, #tpu.memory_space<vmem>>, vector<8x32xf32>
      %c0_78 = arith.constant 0 : index
      %c0_79 = arith.constant 0 : index
      %219 = vector.load %arg8[%c0_78, %c0_79] : memref<8x32xf32, #tpu.memory_space<vmem>>, vector<8x32xf32>
      tpu.vector_store %arg8[%c0_78, %c0_79], %218 {strides = array<i32>} : memref<8x32xf32, #tpu.memory_space<vmem>>, vector<8x32xf32>,
    } else {
    }
    %c0 = arith.constant 0 : index
    %c0_1 = arith.constant 0 : index
    %c0_2 = arith.constant 0 : index
    %3 = vector.load %arg2[%c0, %c0_1, %c0_2] : memref<1x8x10xf32, #tpu.memory_space<vmem>>, vector<1x8x10xf32>
    %4 = vector.shape_cast %3 : vector<1x8x10xf32> to vector<8x10xf32>
    %c0_3 = arith.constant 0 : index
    %c0_4 = arith.constant 0 : index
    %c0_5 = arith.constant 0 : index
    %c0_6 = arith.constant 0 : index
    %5 = vector.load %arg3[%c0_3, %c0_4, %c0_5, %c0_6] : memref<1x9x8x8xf32, #tpu.memory_space<vmem>>, vector<1x9x8x8xf32>
    %6 = vector.shape_cast %5 : vector<1x9x8x8xf32> to vector<9x8x8xf32>
    %c0_7 = arith.constant 0 : index
    %c0_8 = arith.constant 0 : index
    %7 = vector.load %arg8[%c0_7, %c0_8] : memref<8x32xf32, #tpu.memory_space<vmem>>, vector<8x32xf32>
    %8 = tpu.iota {dimensions = array<i32: 0>} : vector<9x8x1xi32>
    %c4_i32 = arith.constant 4 : i32
    %9 = vector.broadcast %c4_i32 : i32 to vector<9x8x1xi32>
    %10 = arith.cmpi slt, %8, %9 : vector<9x8x1xi32>
    %c0_9 = arith.constant 0 : index
    %c0_10 = arith.constant 0 : index
    %11 = vector.load %arg5[%c0_9, %c0_10] : memref<368x128xbf16, #tpu.memory_space<vmem>>, vector<10x32xbf16>
    %12 = arith.truncf %4 : vector<8x10xf32> to vector<8x10xbf16>
    %cst = arith.constant dense<0.000000e+00> : vector<8x32xf32>
    %13 = tpu.matmul %12, %11, %cst {dimension_numbers = #tpu.dot_dimension_numbers<[1], [0], [0], [1], [0, 0, 1, 1], [], []>} : vector<8x10xbf16>, vector<10x32xbf16>, vector<8x32xf32> -> vector<8x32xf32>
    %c0_11 = arith.constant 0 : index
    %c0_12 = arith.constant 0 : index
    %14 = vector.load %arg6[%c0_11, %c0_12] : memref<40x128xf32, #tpu.memory_space<vmem>>, vector<1x32xf32>
    %15 = vector.broadcast %14 : vector<1x32xf32> to vector<8x32xf32>
    %16 = arith.addf %13, %15 : vector<8x32xf32>
    %c16 = arith.constant 16 : index
    %c0_13 = arith.constant 0 : index
    %17 = vector.load %arg5[%c16, %c0_13] : memref<368x128xbf16, #tpu.memory_space<vmem>>, vector<8x64xbf16>
    %18 = vector.shape_cast %6 : vector<9x8x8xf32> to vector<72x8xf32>
    %19 = arith.truncf %18 : vector<72x8xf32> to vector<72x8xbf16>
    %cst_14 = arith.constant dense<0.000000e+00> : vector<72x64xf32>
    %20 = tpu.matmul %19, %17, %cst_14 {dimension_numbers = #tpu.dot_dimension_numbers<[1], [0], [0], [1], [0, 0, 1, 1], [], []>} : vector<72x8xbf16>, vector<8x64xbf16>, vector<72x64xf32> -> vector<72x64xf32>
    %21 = vector.shape_cast %20 : vector<72x64xf32> to vector<9x8x64xf32>
    %c1 = arith.constant 1 : index
    %c0_15 = arith.constant 0 : index
    %22 = vector.load %arg6[%c1, %c0_15] : memref<40x128xf32, #tpu.memory_space<vmem>>, vector<1x64xf32>
    %23 = vector.shape_cast %22 : vector<1x64xf32> to vector<1x1x64xf32>
    %24 = vector.broadcast %23 : vector<1x1x64xf32> to vector<9x8x64xf32>
    %25 = arith.addf %21, %24 : vector<9x8x64xf32>
    %26 = vector.extract_strided_slice %25 {offsets = [0, 0, 0], sizes = [9, 8, 32], strides = [1, 1, 1]} : vector<9x8x64xf32> to vector<9x8x32xf32>
    %27 = vector.extract_strided_slice %25 {offsets = [0, 0, 32], sizes = [9, 8, 32], strides = [1, 1, 1]} : vector<9x8x64xf32> to vector<9x8x32xf32>
    %28 = vector.shape_cast %10 : vector<9x8x1xi1> to vector<9x8x1xi1>
    %29 = vector.broadcast %28 : vector<9x8x1xi1> to vector<9x8x32xi1>
    %30 = arith.select %29, %26, %27 : vector<9x8x32xi1>, vector<9x8x32xf32>
    %c32 = arith.constant 32 : index
    %c0_16 = arith.constant 0 : index
    %31 = vector.load %arg5[%c32, %c0_16] : memref<368x128xbf16, #tpu.memory_space<vmem>>, vector<32x32xbf16>
    %32 = arith.truncf %16 : vector<8x32xf32> to vector<8x32xbf16>
    %cst_17 = arith.constant dense<0.000000e+00> : vector<8x32xf32>
    %33 = tpu.matmul %32, %31, %cst_17 {dimension_numbers = #tpu.dot_dimension_numbers<[1], [0], [0], [1], [0, 0, 1, 1], [], []>} : vector<8x32xbf16>, vector<32x32xbf16>, vector<8x32xf32> -> vector<8x32xf32>
    %cst_18 = arith.constant 0.353553385 : f32
    %34 = vector.broadcast %cst_18 : f32 to vector<8x32xf32>
    %35 = arith.mulf %33, %34 : vector<8x32xf32>
    %c96 = arith.constant 96 : index
    %c0_19 = arith.constant 0 : index
    %36 = vector.load %arg5[%c96, %c0_19] : memref<368x128xbf16, #tpu.memory_space<vmem>>, vector<32x128xbf16>
    %37 = vector.shape_cast %30 : vector<9x8x32xf32> to vector<72x32xf32>
    %38 = arith.truncf %37 : vector<72x32xf32> to vector<72x32xbf16>
    %cst_20 = arith.constant dense<0.000000e+00> : vector<72x128xf32>
    %39 = tpu.matmul %38, %36, %cst_20 {dimension_numbers = #tpu.dot_dimension_numbers<[1], [0], [0], [1], [0, 0, 1, 1], [], []>} : vector<72x32xbf16>, vector<32x128xbf16>, vector<72x128xf32> -> vector<72x128xf32>
    %40 = vector.shape_cast %39 : vector<72x128xf32> to vector<9x8x128xf32>
    %41 = vector.extract_strided_slice %40 {offsets = [0, 0, 0], sizes = [9, 8, 32], strides = [1, 1, 1]} : vector<9x8x128xf32> to vector<9x8x32xf32>
    %42 = vector.extract_strided_slice %40 {offsets = [0, 0, 64], sizes = [9, 8, 32], strides = [1, 1, 1]} : vector<9x8x128xf32> to vector<9x8x32xf32>
    %43 = vector.shape_cast %10 : vector<9x8x1xi1> to vector<9x8x1xi1>
    %44 = vector.broadcast %43 : vector<9x8x1xi1> to vector<9x8x32xi1>
    %45 = arith.select %44, %41, %42 : vector<9x8x32xi1>, vector<9x8x32xf32>
    %46 = vector.extract_strided_slice %40 {offsets = [0, 0, 32], sizes = [9, 8, 32], strides = [1, 1, 1]} : vector<9x8x128xf32> to vector<9x8x32xf32>
    %47 = vector.extract_strided_slice %40 {offsets = [0, 0, 96], sizes = [9, 8, 32], strides = [1, 1, 1]} : vector<9x8x128xf32> to vector<9x8x32xf32>
    %48 = vector.shape_cast %10 : vector<9x8x1xi1> to vector<9x8x1xi1>
    %49 = vector.broadcast %48 : vector<9x8x1xi1> to vector<9x8x32xi1>
    %50 = arith.select %49, %46, %47 : vector<9x8x32xi1>, vector<9x8x32xf32>
    %51 = vector.shape_cast %35 : vector<8x32xf32> to vector<1x8x32xf32>
    %52 = vector.broadcast %51 : vector<1x8x32xf32> to vector<9x8x32xf32>
    %53 = arith.mulf %52, %45 : vector<9x8x32xf32>
    %c320 = arith.constant 320 : index
    %c0_21 = arith.constant 0 : index
    %54 = vector.load %arg5[%c320, %c0_21] : memref<368x128xbf16, #tpu.memory_space<vmem>>, vector<32x4xbf16>
    %55 = vector.shape_cast %53 : vector<9x8x32xf32> to vector<72x32xf32>
    %56 = arith.truncf %55 : vector<72x32xf32> to vector<72x32xbf16>
    %cst_22 = arith.constant dense<0.000000e+00> : vector<72x4xf32>
    %57 = tpu.matmul %56, %54, %cst_22 {dimension_numbers = #tpu.dot_dimension_numbers<[1], [0], [0], [1], [0, 0, 1, 1], [], []>} : vector<72x32xbf16>, vector<32x4xbf16>, vector<72x4xf32> -> vector<72x4xf32>
    %58 = vector.shape_cast %57 : vector<72x4xf32> to vector<9x8x4xf32>
    %cst_23 = arith.constant dense<0xFF800000> : vector<8x4xf32>
    %59 = vector.multi_reduction <maximumf>, %58, %cst_23 [0] : vector<9x8x4xf32> to vector<8x4xf32>
    %60 = vector.shape_cast %59 : vector<8x4xf32> to vector<1x8x4xf32>
    %61 = vector.broadcast %60 : vector<1x8x4xf32> to vector<9x8x4xf32>
    %62 = arith.subf %58, %61 : vector<9x8x4xf32>
    %63 = math.exp %62 : vector<9x8x4xf32>
    %64 = vector.extract_strided_slice %63 {offsets = [0, 0, 0], sizes = [4, 8, 4], strides = [1, 1, 1]} : vector<9x8x4xf32> to vector<4x8x4xf32>
    %cst_24 = arith.constant dense<0.000000e+00> : vector<8x4xf32>
    %65 = vector.multi_reduction <add>, %64, %cst_24 [0] : vector<4x8x4xf32> to vector<8x4xf32>
    %66 = vector.extract_strided_slice %63 {offsets = [4, 0, 0], sizes = [5, 8, 4], strides = [1, 1, 1]} : vector<9x8x4xf32> to vector<5x8x4xf32>
    %cst_25 = arith.constant dense<0.000000e+00> : vector<8x4xf32>
    %67 = vector.multi_reduction <add>, %66, %cst_25 [0] : vector<5x8x4xf32> to vector<8x4xf32>
    %cst_26 = arith.constant 1.000000e+00 : f32
    %68 = vector.broadcast %cst_26 : f32 to vector<8x4xf32>
    %69 = arith.divf %68, %65 : vector<8x4xf32>
    %70 = vector.shape_cast %69 : vector<8x4xf32> to vector<1x8x4xf32>
    %cst_27 = arith.constant 1.000000e+00 : f32
    %71 = vector.broadcast %cst_27 : f32 to vector<8x4xf32>
    %72 = arith.divf %71, %67 : vector<8x4xf32>
    %73 = vector.shape_cast %72 : vector<8x4xf32> to vector<1x8x4xf32>
    %74 = vector.shape_cast %10 : vector<9x8x1xi1> to vector<9x8x1xi1>
    %75 = vector.broadcast %74 : vector<9x8x1xi1> to vector<9x8x4xi1>
    %76 = vector.shape_cast %70 : vector<1x8x4xf32> to vector<1x8x4xf32>
    %77 = vector.broadcast %76 : vector<1x8x4xf32> to vector<9x8x4xf32>
    %78 = vector.shape_cast %73 : vector<1x8x4xf32> to vector<1x8x4xf32>
    %79 = vector.broadcast %78 : vector<1x8x4xf32> to vector<9x8x4xf32>
    %80 = arith.select %75, %77, %79 : vector<9x8x4xi1>, vector<9x8x4xf32>
    %81 = arith.mulf %63, %80 : vector<9x8x4xf32>
    %c352 = arith.constant 352 : index
    %c0_28 = arith.constant 0 : index
    %82 = vector.load %arg5[%c352, %c0_28] : memref<368x128xbf16, #tpu.memory_space<vmem>>, vector<4x32xbf16>
    %83 = vector.shape_cast %81 : vector<9x8x4xf32> to vector<72x4xf32>
    %84 = arith.truncf %83 : vector<72x4xf32> to vector<72x4xbf16>
    %cst_29 = arith.constant dense<0.000000e+00> : vector<72x32xf32>
    %85 = tpu.matmul %84, %82, %cst_29 {dimension_numbers = #tpu.dot_dimension_numbers<[1], [0], [0], [1], [0, 0, 1, 1], [], []>} : vector<72x4xbf16>, vector<4x32xbf16>, vector<72x32xf32> -> vector<72x32xf32>
    %86 = vector.shape_cast %85 : vector<72x32xf32> to vector<9x8x32xf32>
    %87 = arith.mulf %86, %50 : vector<9x8x32xf32>
    %cst_30 = arith.constant dense<0.000000e+00> : vector<8x32xf32>
    %88 = vector.multi_reduction <add>, %87, %cst_30 [0] : vector<9x8x32xf32> to vector<8x32xf32>
    %c160 = arith.constant 160 : index
    %c0_31 = arith.constant 0 : index
    %89 = vector.load %arg5[%c160, %c0_31] : memref<368x128xbf16, #tpu.memory_space<vmem>>, vector<32x32xbf16>
    %90 = arith.truncf %88 : vector<8x32xf32> to vector<8x32xbf16>
    %cst_32 = arith.constant dense<0.000000e+00> : vector<8x32xf32>
    %91 = tpu.matmul %90, %89, %cst_32 {dimension_numbers = #tpu.dot_dimension_numbers<[1], [0], [0], [1], [0, 0, 1, 1], [], []>} : vector<8x32xbf16>, vector<32x32xbf16>, vector<8x32xf32> -> vector<8x32xf32>
    %92 = arith.addf %16, %91 : vector<8x32xf32>
    %c2 = arith.constant 2 : index
    %c0_33 = arith.constant 0 : index
    %93 = vector.load %arg6[%c2, %c0_33] : memref<40x128xf32, #tpu.memory_space<vmem>>, vector<1x32xf32>
    %94 = vector.broadcast %93 : vector<1x32xf32> to vector<8x32xf32>
    %95 = arith.addf %92, %94 : vector<8x32xf32>
    %c64 = arith.constant 64 : index
    %c0_34 = arith.constant 0 : index
    %96 = vector.load %arg5[%c64, %c0_34] : memref<368x128xbf16, #tpu.memory_space<vmem>>, vector<32x32xbf16>
    %97 = arith.truncf %95 : vector<8x32xf32> to vector<8x32xbf16>
    %cst_35 = arith.constant dense<0.000000e+00> : vector<8x32xf32>
    %98 = tpu.matmul %97, %96, %cst_35 {dimension_numbers = #tpu.dot_dimension_numbers<[1], [0], [0], [1], [0, 0, 1, 1], [], []>} : vector<8x32xbf16>, vector<32x32xbf16>, vector<8x32xf32> -> vector<8x32xf32>
    %cst_36 = arith.constant 0.353553385 : f32
    %99 = vector.broadcast %cst_36 : f32 to vector<8x32xf32>
    %100 = arith.mulf %98, %99 : vector<8x32xf32>
    %c128 = arith.constant 128 : index
    %c0_37 = arith.constant 0 : index
    %101 = vector.load %arg5[%c128, %c0_37] : memref<368x128xbf16, #tpu.memory_space<vmem>>, vector<32x128xbf16>
    %102 = vector.shape_cast %30 : vector<9x8x32xf32> to vector<72x32xf32>
    %103 = arith.truncf %102 : vector<72x32xf32> to vector<72x32xbf16>
    %cst_38 = arith.constant dense<0.000000e+00> : vector<72x128xf32>
    %104 = tpu.matmul %103, %101, %cst_38 {dimension_numbers = #tpu.dot_dimension_numbers<[1], [0], [0], [1], [0, 0, 1, 1], [], []>} : vector<72x32xbf16>, vector<32x128xbf16>, vector<72x128xf32> -> vector<72x128xf32>
    %105 = vector.shape_cast %104 : vector<72x128xf32> to vector<9x8x128xf32>
    %106 = vector.extract_strided_slice %105 {offsets = [0, 0, 0], sizes = [9, 8, 32], strides = [1, 1, 1]} : vector<9x8x128xf32> to vector<9x8x32xf32>
    %107 = vector.extract_strided_slice %105 {offsets = [0, 0, 64], sizes = [9, 8, 32], strides = [1, 1, 1]} : vector<9x8x128xf32> to vector<9x8x32xf32>
    %108 = vector.shape_cast %10 : vector<9x8x1xi1> to vector<9x8x1xi1>
    %109 = vector.broadcast %108 : vector<9x8x1xi1> to vector<9x8x32xi1>
    %110 = arith.select %109, %106, %107 : vector<9x8x32xi1>, vector<9x8x32xf32>
    %111 = vector.extract_strided_slice %105 {offsets = [0, 0, 32], sizes = [9, 8, 32], strides = [1, 1, 1]} : vector<9x8x128xf32> to vector<9x8x32xf32>
    %112 = vector.extract_strided_slice %105 {offsets = [0, 0, 96], sizes = [9, 8, 32], strides = [1, 1, 1]} : vector<9x8x128xf32> to vector<9x8x32xf32>
    %113 = vector.shape_cast %10 : vector<9x8x1xi1> to vector<9x8x1xi1>
    %114 = vector.broadcast %113 : vector<9x8x1xi1> to vector<9x8x32xi1>
    %115 = arith.select %114, %111, %112 : vector<9x8x32xi1>, vector<9x8x32xf32>
    %116 = vector.shape_cast %100 : vector<8x32xf32> to vector<1x8x32xf32>
    %117 = vector.broadcast %116 : vector<1x8x32xf32> to vector<9x8x32xf32>
    %118 = arith.mulf %117, %110 : vector<9x8x32xf32>
    %c320_39 = arith.constant 320 : index
    %c0_40 = arith.constant 0 : index
    %119 = vector.load %arg5[%c320_39, %c0_40] : memref<368x128xbf16, #tpu.memory_space<vmem>>, vector<32x4xbf16>
    %120 = vector.shape_cast %118 : vector<9x8x32xf32> to vector<72x32xf32>
    %121 = arith.truncf %120 : vector<72x32xf32> to vector<72x32xbf16>
    %cst_41 = arith.constant dense<0.000000e+00> : vector<72x4xf32>
    %122 = tpu.matmul %121, %119, %cst_41 {dimension_numbers = #tpu.dot_dimension_numbers<[1], [0], [0], [1], [0, 0, 1, 1], [], []>} : vector<72x32xbf16>, vector<32x4xbf16>, vector<72x4xf32> -> vector<72x4xf32>
    %123 = vector.shape_cast %122 : vector<72x4xf32> to vector<9x8x4xf32>
    %cst_42 = arith.constant dense<0xFF800000> : vector<8x4xf32>
    %124 = vector.multi_reduction <maximumf>, %123, %cst_42 [0] : vector<9x8x4xf32> to vector<8x4xf32>
    %125 = vector.shape_cast %124 : vector<8x4xf32> to vector<1x8x4xf32>
    %126 = vector.broadcast %125 : vector<1x8x4xf32> to vector<9x8x4xf32>
    %127 = arith.subf %123, %126 : vector<9x8x4xf32>
    %128 = math.exp %127 : vector<9x8x4xf32>
    %129 = vector.extract_strided_slice %128 {offsets = [0, 0, 0], sizes = [4, 8, 4], strides = [1, 1, 1]} : vector<9x8x4xf32> to vector<4x8x4xf32>
    %cst_43 = arith.constant dense<0.000000e+00> : vector<8x4xf32>
    %130 = vector.multi_reduction <add>, %129, %cst_43 [0] : vector<4x8x4xf32> to vector<8x4xf32>
    %131 = vector.extract_strided_slice %128 {offsets = [4, 0, 0], sizes = [5, 8, 4], strides = [1, 1, 1]} : vector<9x8x4xf32> to vector<5x8x4xf32>
    %cst_44 = arith.constant dense<0.000000e+00> : vector<8x4xf32>
    %132 = vector.multi_reduction <add>, %131, %cst_44 [0] : vector<5x8x4xf32> to vector<8x4xf32>
    %cst_45 = arith.constant 1.000000e+00 : f32
    %133 = vector.broadcast %cst_45 : f32 to vector<8x4xf32>
    %134 = arith.divf %133, %130 : vector<8x4xf32>
    %135 = vector.shape_cast %134 : vector<8x4xf32> to vector<1x8x4xf32>
    %cst_46 = arith.constant 1.000000e+00 : f32
    %136 = vector.broadcast %cst_46 : f32 to vector<8x4xf32>
    %137 = arith.divf %136, %132 : vector<8x4xf32>
    %138 = vector.shape_cast %137 : vector<8x4xf32> to vector<1x8x4xf32>
    %139 = vector.shape_cast %10 : vector<9x8x1xi1> to vector<9x8x1xi1>
    %140 = vector.broadcast %139 : vector<9x8x1xi1> to vector<9x8x4xi1>
    %141 = vector.shape_cast %135 : vector<1x8x4xf32> to vector<1x8x4xf32>
    %142 = vector.broadcast %141 : vector<1x8x4xf32> to vector<9x8x4xf32>
    %143 = vector.shape_cast %138 : vector<1x8x4xf32> to vector<1x8x4xf32>
    %144 = vector.broadcast %143 : vector<1x8x4xf32> to vector<9x8x4xf32>
    %145 = arith.select %140, %142, %144 : vector<9x8x4xi1>, vector<9x8x4xf32>
    %146 = arith.mulf %128, %145 : vector<9x8x4xf32>
    %c352_47 = arith.constant 352 : index
    %c0_48 = arith.constant 0 : index
    %147 = vector.load %arg5[%c352_47, %c0_48] : memref<368x128xbf16, #tpu.memory_space<vmem>>, vector<4x32xbf16>
    %148 = vector.shape_cast %146 : vector<9x8x4xf32> to vector<72x4xf32>
    %149 = arith.truncf %148 : vector<72x4xf32> to vector<72x4xbf16>
    %cst_49 = arith.constant dense<0.000000e+00> : vector<72x32xf32>
    %150 = tpu.matmul %149, %147, %cst_49 {dimension_numbers = #tpu.dot_dimension_numbers<[1], [0], [0], [1], [0, 0, 1, 1], [], []>} : vector<72x4xbf16>, vector<4x32xbf16>, vector<72x32xf32> -> vector<72x32xf32>
    %151 = vector.shape_cast %150 : vector<72x32xf32> to vector<9x8x32xf32>
    %152 = arith.mulf %151, %115 : vector<9x8x32xf32>
    %cst_50 = arith.constant dense<0.000000e+00> : vector<8x32xf32>
    %153 = vector.multi_reduction <add>, %152, %cst_50 [0] : vector<9x8x32xf32> to vector<8x32xf32>
    %c192 = arith.constant 192 : index
    %c0_51 = arith.constant 0 : index
    %154 = vector.load %arg5[%c192, %c0_51] : memref<368x128xbf16, #tpu.memory_space<vmem>>, vector<32x32xbf16>
    %155 = arith.truncf %153 : vector<8x32xf32> to vector<8x32xbf16>
    %cst_52 = arith.constant dense<0.000000e+00> : vector<8x32xf32>
    %156 = tpu.matmul %155, %154, %cst_52 {dimension_numbers = #tpu.dot_dimension_numbers<[1], [0], [0], [1], [0, 0, 1, 1], [], []>} : vector<8x32xbf16>, vector<32x32xbf16>, vector<8x32xf32> -> vector<8x32xf32>
    %157 = arith.addf %95, %156 : vector<8x32xf32>
    %c3 = arith.constant 3 : index
    %c0_53 = arith.constant 0 : index
    %158 = vector.load %arg6[%c3, %c0_53] : memref<40x128xf32, #tpu.memory_space<vmem>>, vector<1x32xf32>
    %159 = vector.broadcast %158 : vector<1x32xf32> to vector<8x32xf32>
    %160 = arith.addf %157, %159 : vector<8x32xf32>
    %cst_54 = arith.constant 0.000000e+00 : f32
    %161 = vector.broadcast %cst_54 : f32 to vector<8x32xf32>
    %162 = arith.maximumf %160, %161 : vector<8x32xf32>
    %c224 = arith.constant 224 : index
    %c0_55 = arith.constant 0 : index
    %163 = vector.load %arg5[%c224, %c0_55] : memref<368x128xbf16, #tpu.memory_space<vmem>>, vector<32x32xbf16>
    %164 = arith.truncf %162 : vector<8x32xf32> to vector<8x32xbf16>
    %cst_56 = arith.constant dense<0.000000e+00> : vector<8x32xf32>
    %165 = tpu.matmul %164, %163, %cst_56 {dimension_numbers = #tpu.dot_dimension_numbers<[1], [0], [0], [1], [0, 0, 1, 1], [], []>} : vector<8x32xbf16>, vector<32x32xbf16>, vector<8x32xf32> -> vector<8x32xf32>
    %c4 = arith.constant 4 : index
    %c0_57 = arith.constant 0 : index
    %166 = vector.load %arg6[%c4, %c0_57] : memref<40x128xf32, #tpu.memory_space<vmem>>, vector<1x32xf32>
    %167 = vector.broadcast %166 : vector<1x32xf32> to vector<8x32xf32>
    %168 = arith.addf %165, %167 : vector<8x32xf32>
    %cst_58 = arith.constant 0.000000e+00 : f32
    %169 = vector.broadcast %cst_58 : f32 to vector<8x32xf32>
    %170 = arith.maximumf %168, %169 : vector<8x32xf32>
    %c256 = arith.constant 256 : index
    %c0_59 = arith.constant 0 : index
    %171 = vector.load %arg5[%c256, %c0_59] : memref<368x128xbf16, #tpu.memory_space<vmem>>, vector<32x96xbf16>
    %172 = arith.truncf %170 : vector<8x32xf32> to vector<8x32xbf16>
    %cst_60 = arith.constant dense<0.000000e+00> : vector<8x96xf32>
    %173 = tpu.matmul %172, %171, %cst_60 {dimension_numbers = #tpu.dot_dimension_numbers<[1], [0], [0], [1], [0, 0, 1, 1], [], []>} : vector<8x32xbf16>, vector<32x96xbf16>, vector<8x96xf32> -> vector<8x96xf32>
    %c5 = arith.constant 5 : index
    %c0_61 = arith.constant 0 : index
    %174 = vector.load %arg6[%c5, %c0_61] : memref<40x128xf32, #tpu.memory_space<vmem>>, vector<1x96xf32>
    %175 = vector.broadcast %174 : vector<1x96xf32> to vector<8x96xf32>
    %176 = arith.addf %173, %175 : vector<8x96xf32>
    %c288 = arith.constant 288 : index
    %c0_62 = arith.constant 0 : index
    %177 = vector.load %arg5[%c288, %c0_62] : memref<368x128xbf16, #tpu.memory_space<vmem>>, vector<32x96xbf16>
    %178 = arith.truncf %7 : vector<8x32xf32> to vector<8x32xbf16>
    %cst_63 = arith.constant dense<0.000000e+00> : vector<8x96xf32>
    %179 = tpu.matmul %178, %177, %cst_63 {dimension_numbers = #tpu.dot_dimension_numbers<[1], [0], [0], [1], [0, 0, 1, 1], [], []>} : vector<8x32xbf16>, vector<32x96xbf16>, vector<8x96xf32> -> vector<8x96xf32>
    %c6 = arith.constant 6 : index
    %c0_64 = arith.constant 0 : index
    %180 = vector.load %arg6[%c6, %c0_64] : memref<40x128xf32, #tpu.memory_space<vmem>>, vector<1x96xf32>
    %181 = vector.broadcast %180 : vector<1x96xf32> to vector<8x96xf32>
    %182 = arith.addf %179, %181 : vector<8x96xf32>
    %183 = vector.extract_strided_slice %176 {offsets = [0, 0], sizes = [8, 32], strides = [1, 1]} : vector<8x96xf32> to vector<8x32xf32>
    %184 = vector.extract_strided_slice %182 {offsets = [0, 0], sizes = [8, 32], strides = [1, 1]} : vector<8x96xf32> to vector<8x32xf32>
    %185 = arith.addf %183, %184 : vector<8x32xf32>
    %186 = arith.negf %185 : vector<8x32xf32>
    %187 = math.exp %186 : vector<8x32xf32>
    %cst_65 = arith.constant 1.000000e+00 : f32
    %188 = vector.broadcast %cst_65 : f32 to vector<8x32xf32>
    %189 = arith.addf %188, %187 : vector<8x32xf32>
    %190 = arith.divf %188, %189 : vector<8x32xf32>
    %191 = vector.extract_strided_slice %176 {offsets = [0, 32], sizes = [8, 32], strides = [1, 1]} : vector<8x96xf32> to vector<8x32xf32>
    %192 = vector.extract_strided_slice %182 {offsets = [0, 32], sizes = [8, 32], strides = [1, 1]} : vector<8x96xf32> to vector<8x32xf32>
    %193 = arith.addf %191, %192 : vector<8x32xf32>
    %194 = arith.negf %193 : vector<8x32xf32>
    %195 = math.exp %194 : vector<8x32xf32>
    %cst_66 = arith.constant 1.000000e+00 : f32
    %196 = vector.broadcast %cst_66 : f32 to vector<8x32xf32>
    %197 = arith.addf %196, %195 : vector<8x32xf32>
    %198 = arith.divf %196, %197 : vector<8x32xf32>
    %199 = vector.extract_strided_slice %176 {offsets = [0, 64], sizes = [8, 32], strides = [1, 1]} : vector<8x96xf32> to vector<8x32xf32>
    %200 = vector.extract_strided_slice %182 {offsets = [0, 64], sizes = [8, 32], strides = [1, 1]} : vector<8x96xf32> to vector<8x32xf32>
    %201 = arith.mulf %190, %200 : vector<8x32xf32>
    %202 = arith.addf %199, %201 : vector<8x32xf32>
    %203 = math.tanh %202 : vector<8x32xf32>
    %cst_67 = arith.constant 1.000000e+00 : f32
    %204 = vector.broadcast %cst_67 : f32 to vector<8x32xf32>
    %205 = arith.subf %204, %198 : vector<8x32xf32>
    %206 = arith.mulf %205, %203 : vector<8x32xf32>
    %207 = arith.mulf %198, %7 : vector<8x32xf32>
    %208 = arith.addf %206, %207 : vector<8x32xf32>
    %c0_68 = arith.constant 0 : index
    %c0_69 = arith.constant 0 : index
    %209 = vector.load %arg8[%c0_68, %c0_69] : memref<8x32xf32, #tpu.memory_space<vmem>>, vector<8x32xf32>
    tpu.vector_store %arg8[%c0_68, %c0_69], %208 {strides = array<i32>} : memref<8x32xf32, #tpu.memory_space<vmem>>, vector<8x32xf32>,
    %c8 = arith.constant 8 : index
    %c0_70 = arith.constant 0 : index
    %210 = vector.load %arg6[%c8, %c0_70] : memref<40x128xf32, #tpu.memory_space<vmem>>, vector<32x128xf32>
    %cst_71 = arith.constant dense<0.000000e+00> : vector<8x128xf32>
    %211 = tpu.matmul %208, %210, %cst_71 {dimension_numbers = #tpu.dot_dimension_numbers<[1], [0], [0], [1], [0, 0, 1, 1], [], []>} : vector<8x32xf32>, vector<32x128xf32>, vector<8x128xf32> -> vector<8x128xf32>
    %c7 = arith.constant 7 : index
    %c0_72 = arith.constant 0 : index
    %212 = vector.load %arg6[%c7, %c0_72] : memref<40x128xf32, #tpu.memory_space<vmem>>, vector<1x128xf32>
    %213 = vector.broadcast %212 : vector<1x128xf32> to vector<8x128xf32>
    %214 = arith.addf %211, %213 : vector<8x128xf32>
    %c0_73 = arith.constant 0 : index
    %c0_74 = arith.constant 0 : index
    %c0_75 = arith.constant 0 : index
    %215 = vector.load %arg7[%c0_73, %c0_74, %c0_75] : memref<1x8x128xf32, #tpu.memory_space<vmem>>, vector<1x8x128xf32>
    %216 = vector.shape_cast %215 : vector<1x8x128xf32> to vector<8x128xf32>
    %217 = vector.shape_cast %214 : vector<8x128xf32> to vector<1x8x128xf32>
    tpu.vector_store %arg7[%c0_73, %c0_74, %c0_75], %217 {strides = array<i32>} : memref<1x8x128xf32, #tpu.memory_space<vmem>>, vector<1x8x128xf32>,
    return
  }
  func.func @transform_0(%arg0: i32, %arg1: i32) -> (i32, i32, i32) {
    %c0_i32 = arith.constant 0 : i32
    %c0_i32_0 = arith.constant 0 : i32
    return %arg1, %arg0, %c0_i32 : i32, i32, i32
  }
  func.func @transform_1(%arg0: i32, %arg1: i32) -> (i32, i32, i32, i32) {
    %c0_i32 = arith.constant 0 : i32
    %c0_i32_0 = arith.constant 0 : i32
    %c0_i32_1 = arith.constant 0 : i32
    return %arg1, %c0_i32, %arg0, %c0_i32_0 : i32, i32, i32, i32
  }
  func.func @transform_2(%arg0: i32, %arg1: i32) -> (i32, i32) {
    %c0_i32 = arith.constant 0 : i32
    %c0_i32_0 = arith.constant 0 : i32
    return %arg0, %c0_i32 : i32, i32
  }
  func.func @transform_3(%arg0: i32, %arg1: i32) -> (i32, i32) {
    %c0_i32 = arith.constant 0 : i32
    %c0_i32_0 = arith.constant 0 : i32
    %c0_i32_1 = arith.constant 0 : i32
    return %c0_i32, %c0_i32_0 : i32, i32
  }
  func.func @transform_4(%arg0: i32, %arg1: i32) -> (i32, i32) {
    %c0_i32 = arith.constant 0 : i32
    %c0_i32_0 = arith.constant 0 : i32
    %c0_i32_1 = arith.constant 0 : i32
    return %c0_i32, %c0_i32_0 : i32, i32
  }
  func.func @transform_5(%arg0: i32, %arg1: i32) -> (i32, i32, i32) {
    %c0_i32 = arith.constant 0 : i32
    %c0_i32_0 = arith.constant 0 : i32
    return %arg1, %arg0, %c0_i32 : i32, i32, i32
  }
}

</mosaic_0001>

<llo_original>
// kernel: multi_att_rnn_agent_rollout.1
$region0: #{multi_att_rnn_agent_rollout.1}
  #allocation0 [shape = 'u32[]', space=smem, size = 0x4, offset = 0x4, fixed_abs, tag = 'smem constant byte address 0x4 - core index']
  #allocation1 [shape = 'u32[144,128]{1,0:T(1,128)}', space=vmem, size = 0x12000, scoped, tag = 'internal scratch']
  #allocation2 [shape = 'f32[8,32]{1,0:T(8,128)}', space=vmem, size = 0x1000, scoped, tag = 'scratch operand']
  %s0 = inlined_call_operand.vmem [shape: f32[8,8,10], index: 0, kind: input, shape index: {}]
  %s1 = inlined_call_operand.vmem [shape: f32[8,9,8,8], index: 1, kind: input, shape index: {}]
  %s2 = inlined_call_operand.vmem [shape: f32[8,32], index: 2, kind: input, shape index: {}]
  %s3 = inlined_call_operand.vmem [shape: bf16[368,128], index: 3, kind: input, shape index: {}]
  %s4 = inlined_call_operand.vmem [shape: f32[40,128], index: 4, kind: input, shape index: {}]
  %s5 = inlined_call_operand.vmem [shape: f32[8,8,128], index: 5, kind: output, shape index: {}]
  %s6 = sld [smem:[#allocation0]]
  $region57: #{multi_att_rnn_agent_rollout.1} parent=0
    _
  %s8 = ssub.s32 1, %s6
  %s9 = scalar_select 0, %s8, %s6
  loop: start=0, step=1, limit=10
  $region2: #{multi_att_rnn_agent_rollout.1} parent=0 // loop_pre_header
    _
  $region3: #{multi_att_rnn_agent_rollout.1} parent=0 // loop_header
    %s11 = sphi 0, %s15
    %p12 = scmp.ge.s32.totalorder %s11, 10
    %s18 = sphi 0, %s30
    %s19 = sphi 0, %s26
    %s20 = sphi 0, %s18
    %s21 = sphi 0, %s19
    %s22 = sphi 0, %s20
    %s23 = sphi 0, %s21
    %s35 = sphi 0, %s37
    %s38 = sphi 0, %s35
    %s39 = sphi 0, %s38
    %s55 = sphi 0, %s39
    %s63 = sphi 0, %s65
    %s66 = sphi 0, %s63
    %s67 = sphi 0, %s66
    %s83 = sphi 0, %s67
    %s89 = sphi 0, %s91
    %s92 = sphi 0, %s89
    %s93 = sphi 0, %s92
    %s109 = sphi 0, %s93
    %s113 = sphi 0, %s113
    %s115 = sphi 0, %s113
    %s116 = sphi 0, %s115
    %s130 = sphi 0, %s116
    %s134 = sphi 0, %s134
    %s136 = sphi 0, %s134
    %s137 = sphi 0, %s136
    %s151 = sphi 0, %s137
    %s159 = sphi 0, %s161
    %s162 = sphi 0, %s159
    %s163 = sphi 0, %s162
    %s179 = sphi 0, %s163
  $region4: #{multi_att_rnn_agent_rollout.1} parent=0 // loop_header_branch
    %14 = sbr.rel (%p12) target = $region8
  $region5: #{multi_att_rnn_agent_rollout.1} parent=0 // loop_body
    %s16 = ssub.s32 %s11, 1
    %s17 = ssub.s32 %s11, 2
    %s24 = sadd.s32 1, %s19
    %p25 = scmp.ge.s32.totalorder %s24, 8
    %s26 = scalar_select %p25, 0, %s24
    %s27 = sadd.s32 1, %s18
    %s28 = scalar_select %p25, %s27, %s18
    %p29 = scmp.ge.s32.totalorder %s28, 1
    %s30 = scalar_select %p29, 0, %s28
    %s31 = ssub.s32 %s19, %s26
    %s32 = ssub.s32 %s18, %s30
    %s33 = sor.u32 %s31, %s32
    %p34 = scmp.eq.s32.totalorder %s33, 0
    %s36 = sadd.s32 %s35, 1
    %s37 = scalar_select %p34, %s35, %s36
    %p40 = pneg %p34
    %p41 = scmp.eq.s32.totalorder %s11, 7
    %p42 = por %p40, %p41
    %p43 = scmp.ne.s32.totalorder %s35, %s38
    %p44 = scmp.eq.s32.totalorder %s11, 0
    %p45 = por %p43, %p44
    %p46 = scmp.ne.s32.totalorder %s35, %s38
    %p47 = scmp.eq.s32.totalorder %s16, 7
    %p48 = por %p46, %p47
    %p49 = scmp.ne.s32.totalorder %s38, %s39
    %p50 = scmp.eq.s32.totalorder %s16, 0
    %p51 = por %p49, %p50
    %p52 = scmp.ne.s32.totalorder %s38, %s39
    %p53 = scmp.eq.s32.totalorder %s17, 7
    %p54 = por %p52, %p53
    %p56 = scmp.ne.s32.totalorder %s39, %s55
    %p57 = scmp.eq.s32.totalorder %s17, 0
    %p58 = por %p56, %p57
    %s59 = ssub.s32 %s19, %s26
    %s60 = ssub.s32 %s18, %s30
    %s61 = sor.u32 %s59, %s60
    %p62 = scmp.eq.s32.totalorder %s61, 0
    %s64 = sadd.s32 %s63, 1
    %s65 = scalar_select %p62, %s63, %s64
    %p68 = pneg %p62
    %p69 = scmp.eq.s32.totalorder %s11, 7
    %p70 = por %p68, %p69
    %p71 = scmp.ne.s32.totalorder %s63, %s66
    %p72 = scmp.eq.s32.totalorder %s11, 0
    %p73 = por %p71, %p72
    %p74 = scmp.ne.s32.totalorder %s63, %s66
    %p75 = scmp.eq.s32.totalorder %s16, 7
    %p76 = por %p74, %p75
    %p77 = scmp.ne.s32.totalorder %s66, %s67
    %p78 = scmp.eq.s32.totalorder %s16, 0
    %p79 = por %p77, %p78
    %p80 = scmp.ne.s32.totalorder %s66, %s67
    %p81 = scmp.eq.s32.totalorder %s17, 7
    %p82 = por %p80, %p81
    %p84 = scmp.ne.s32.totalorder %s67, %s83
    %p85 = scmp.eq.s32.totalorder %s17, 0
    %p86 = por %p84, %p85
    %s87 = ssub.s32 %s18, %s30
    %p88 = scmp.eq.s32.totalorder %s87, 0
    %s90 = sadd.s32 %s89, 1
    %s91 = scalar_select %p88, %s89, %s90
    %p94 = pneg %p88
    %p95 = scmp.eq.s32.totalorder %s11, 7
    %p96 = por %p94, %p95
    %p97 = scmp.ne.s32.totalorder %s89, %s92
    %p98 = scmp.eq.s32.totalorder %s11, 0
    %p99 = por %p97, %p98
    %p100 = scmp.ne.s32.totalorder %s89, %s92
    %p101 = scmp.eq.s32.totalorder %s16, 7
    %p102 = por %p100, %p101
    %p103 = scmp.ne.s32.totalorder %s92, %s93
    %p104 = scmp.eq.s32.totalorder %s16, 0
    %p105 = por %p103, %p104
    %p106 = scmp.ne.s32.totalorder %s92, %s93
    %p107 = scmp.eq.s32.totalorder %s17, 7
    %p108 = por %p106, %p107
    %p110 = scmp.ne.s32.totalorder %s93, %s109
    %p111 = scmp.eq.s32.totalorder %s17, 0
    %p112 = por %p110, %p111
    %s114 = sadd.s32 %s113, 1
    %p117 = scmp.eq.s32.totalorder %s11, 7
    %p118 = scmp.ne.s32.totalorder %s113, %s115
    %p119 = scmp.eq.s32.totalorder %s11, 0
    %p120 = por %p118, %p119
    %p121 = scmp.ne.s32.totalorder %s113, %s115
    %p122 = scmp.eq.s32.totalorder %s16, 7
    %p123 = por %p121, %p122
    %p124 = scmp.ne.s32.totalorder %s115, %s116
    %p125 = scmp.eq.s32.totalorder %s16, 0
    %p126 = por %p124, %p125
    %p127 = scmp.ne.s32.totalorder %s115, %s116
    %p128 = scmp.eq.s32.totalorder %s17, 7
    %p129 = por %p127, %p128
    %p131 = scmp.ne.s32.totalorder %s116, %s130
    %p132 = scmp.eq.s32.totalorder %s17, 0
    %p133 = por %p131, %p132
    %s135 = sadd.s32 %s134, 1
    %p138 = scmp.eq.s32.totalorder %s11, 7
    %p139 = scmp.ne.s32.totalorder %s134, %s136
    %p140 = scmp.eq.s32.totalorder %s11, 0
    %p141 = por %p139, %p140
    %p142 = scmp.ne.s32.totalorder %s134, %s136
    %p143 = scmp.eq.s32.totalorder %s16, 7
    %p144 = por %p142, %p143
    %p145 = scmp.ne.s32.totalorder %s136, %s137
    %p146 = scmp.eq.s32.totalorder %s16, 0
    %p147 = por %p145, %p146
    %p148 = scmp.ne.s32.totalorder %s136, %s137
    %p149 = scmp.eq.s32.totalorder %s17, 7
    %p150 = por %p148, %p149
    %p152 = scmp.ne.s32.totalorder %s137, %s151
    %p153 = scmp.eq.s32.totalorder %s17, 0
    %p154 = por %p152, %p153
    %s155 = ssub.s32 %s19, %s26
    %s156 = ssub.s32 %s18, %s30
    %s157 = sor.u32 %s155, %s156
    %p158 = scmp.eq.s32.totalorder %s157, 0
    %s160 = sadd.s32 %s159, 1
    %s161 = scalar_select %p158, %s159, %s160
    %p164 = pneg %p158
    %p165 = scmp.eq.s32.totalorder %s11, 7
    %p166 = por %p164, %p165
    %p167 = scmp.ne.s32.totalorder %s159, %s162
    %p168 = scmp.eq.s32.totalorder %s11, 0
    %p169 = por %p167, %p168
    %p170 = scmp.ne.s32.totalorder %s159, %s162
    %p171 = scmp.eq.s32.totalorder %s16, 7
    %p172 = por %p170, %p171
    %p173 = scmp.ne.s32.totalorder %s162, %s163
    %p174 = scmp.eq.s32.totalorder %s16, 0
    %p175 = por %p173, %p174
    %p176 = scmp.ne.s32.totalorder %s162, %s163
    %p177 = scmp.eq.s32.totalorder %s17, 7
    %p178 = por %p176, %p177
    %p180 = scmp.ne.s32.totalorder %s163, %s179
    %p181 = scmp.eq.s32.totalorder %s17, 0
    %p182 = por %p180, %p181
    %p183 = scmp.le.s32.totalorder 1, %s11
    %p184 = scmp.lt.s32.totalorder %s11, 9
    %p185 = pnand %p183, %p184
    %p186 = pneg %p185
    // Predicated region
    $region9: #{multi_att_rnn_agent_rollout.1} parent=5 // pred_check
      _
    $region10: #{multi_att_rnn_agent_rollout.1} parent=5 // pred_check_branch
      %188 = sbr.rel (%p185) target = $region12
    $region11: #{multi_att_rnn_agent_rollout.1} parent=5 // pred_region
      %s189 = ssub.s32 %s11, 1
      // Predicated region
      $region13: #{multi_att_rnn_agent_rollout.1} parent=11 // pred_check
        %p190 = pneg %p105
      $region14: #{multi_att_rnn_agent_rollout.1} parent=11 // pred_check_branch
        %192 = sbr.rel (%p190) target = $region16
      $region15: #{multi_att_rnn_agent_rollout.1} parent=11 // pred_region
        %p193 = scmp.lt.s32.totalorder %s20, 0
        %s194 = scalar_select %p193, %s20, 0
        %s195 = smul.addr %s194, 8
        %s196 = scalar_lea.vmem %s2, %s195
      $region16: #{multi_att_rnn_agent_rollout.1} parent=11 // pred_fallthru
        _
      // Predicated region
      $region17: #{multi_att_rnn_agent_rollout.1} parent=11 // pred_check
        %p197 = pneg %p126
      $region18: #{multi_att_rnn_agent_rollout.1} parent=11 // pred_check_branch
        %199 = sbr.rel (%p197) target = $region20
      $region19: #{multi_att_rnn_agent_rollout.1} parent=11 // pred_region
        _
      $region20: #{multi_att_rnn_agent_rollout.1} parent=11 // pred_fallthru
        _
      // Predicated region
      $region21: #{multi_att_rnn_agent_rollout.1} parent=11 // pred_check
        %p200 = pneg %p147
      $region22: #{multi_att_rnn_agent_rollout.1} parent=11 // pred_check_branch
        %202 = sbr.rel (%p200) target = $region24
      $region23: #{multi_att_rnn_agent_rollout.1} parent=11 // pred_region
        _
      $region24: #{multi_att_rnn_agent_rollout.1} parent=11 // pred_fallthru
        _
    $region12: #{multi_att_rnn_agent_rollout.1} parent=5 // pred_fallthru
      _
    %p203 = scmp.lt.s32.totalorder %s11, 8
    // Predicated region
    $region25: #{multi_att_rnn_agent_rollout.1} parent=5 // pred_check
      %p204 = pneg %p203
    $region26: #{multi_att_rnn_agent_rollout.1} parent=5 // pred_check_branch
      %206 = sbr.rel (%p204) target = $region28
    $region27: #{multi_att_rnn_agent_rollout.1} parent=5 // pred_region
      // Predicated region
      $region29: #{multi_att_rnn_agent_rollout.1} parent=27 // pred_check
        %p207 = pneg %p45
      $region30: #{multi_att_rnn_agent_rollout.1} parent=27 // pred_check_branch
        %209 = sbr.rel (%p207) target = $region32
      $region31: #{multi_att_rnn_agent_rollout.1} parent=27 // pred_region
        %p210 = scmp.lt.s32.totalorder %s19, 7
        %s211 = scalar_select %p210, %s19, 7
        %p212 = scmp.lt.s32.totalorder %s18, 0
        %s213 = scalar_select %p212, %s18, 0
        %s214 = sadd.s32 %s213, %s211
        %s215 = smul.addr %s214, 8
        %s216 = scalar_lea.vmem %s0, %s215
      $region32: #{multi_att_rnn_agent_rollout.1} parent=27 // pred_fallthru
        _
      // Predicated region
      $region33: #{multi_att_rnn_agent_rollout.1} parent=27 // pred_check
        %p217 = pneg %p73
      $region34: #{multi_att_rnn_agent_rollout.1} parent=27 // pred_check_branch
        %219 = sbr.rel (%p217) target = $region36
      $region35: #{multi_att_rnn_agent_rollout.1} parent=27 // pred_region
        %p220 = scmp.lt.s32.totalorder %s19, 7
        %s221 = scalar_select %p220, %s19, 7
        %p222 = scmp.lt.s32.totalorder %s18, 0
        %s223 = scalar_select %p222, %s18, 0
        %s224 = smul.addr %s221, 9
        %s225 = sadd.s32 %s223, %s224
        %s226 = smul.addr %s225, 8
        %s227 = scalar_lea.vmem %s1, %s226
      $region36: #{multi_att_rnn_agent_rollout.1} parent=27 // pred_fallthru
        _
    $region28: #{multi_att_rnn_agent_rollout.1} parent=5 // pred_fallthru
      _
    %p228 = scmp.le.s32.totalorder 1, %s11
    %p229 = scmp.lt.s32.totalorder %s11, 9
    %p230 = pnand %p228, %p229
    %p231 = pneg %p230
    // Predicated region
    $region37: #{multi_att_rnn_agent_rollout.1} parent=5 // pred_check
      _
    $region38: #{multi_att_rnn_agent_rollout.1} parent=5 // pred_check_branch
      %233 = sbr.rel (%p230) target = $region40
    $region39: #{multi_att_rnn_agent_rollout.1} parent=5 // pred_region
      %s234 = ssub.s32 %s11, 1
      %p235 = scmp.lt.s32.totalorder %s21, 7
      %s236 = scalar_select %p235, %s21, 7
      %p237 = scmp.lt.s32.totalorder %s20, 0
      %s238 = scalar_select %p237, %s20, 0
      %s239 = sadd.s32 %s238, %s236
      %s240 = smul.addr %s239, 8
      %s241 = scalar_lea.vmem %s0, %s240
      %p242 = pneg %p51
      %p243 = pneg %p48
      %p244 = scmp.lt.s32.totalorder %s21, 7
      %s245 = scalar_select %p244, %s21, 7
      %p246 = scmp.lt.s32.totalorder %s20, 0
      %s247 = scalar_select %p246, %s20, 0
      %s248 = smul.addr %s245, 9
      %s249 = sadd.s32 %s247, %s248
      %s250 = smul.addr %s249, 8
      %s251 = scalar_lea.vmem %s1, %s250
      %p252 = pneg %p79
      %p253 = pneg %p76
      %p254 = scmp.lt.s32.totalorder %s20, 0
      %s255 = scalar_select %p254, %s20, 0
      %s256 = smul.addr %s255, 8
      %s257 = scalar_lea.vmem %s2, %s256
      %p258 = pneg %p105
      %p259 = pneg %p102
      %p260 = pneg %p126
      %p261 = pneg %p123
      %p262 = pneg %p147
      %p263 = pneg %p144
      %p264 = pneg %p175
      %p265 = pneg %p172
      %p266 = scmp.lt.s32.totalorder %s21, 7
      %s267 = scalar_select %p266, %s21, 7
      %p268 = scmp.lt.s32.totalorder %s20, 0
      %s269 = scalar_select %p268, %s20, 0
      %s270 = sadd.s32 %s269, %s267
      %s271 = smul.addr %s270, 8
      %s272 = scalar_lea.vmem %s5, %s271
      %p273 = scmp.lt.s32.totalorder %s21, 7
      %s274 = scalar_select %p273, %s21, 7
      %p275 = scmp.lt.s32.totalorder %s20, 0
      %s276 = scalar_select %p275, %s20, 0
      %s277 = sadd.s32 %s276, %s274
      %s278 = smul.addr %s277, 8
      %s279 = scalar_lea.vmem %s0, %s278
      %p280 = scmp.lt.s32.totalorder %s21, 7
      %s281 = scalar_select %p280, %s21, 7
      %p282 = scmp.lt.s32.totalorder %s20, 0
      %s283 = scalar_select %p282, %s20, 0
      %s284 = smul.addr %s281, 9
      %s285 = sadd.s32 %s283, %s284
      %s286 = smul.addr %s285, 8
      %s287 = scalar_lea.vmem %s1, %s286
      %p288 = scmp.lt.s32.totalorder %s20, 0
      %s289 = scalar_select %p288, %s20, 0
      %s290 = smul.addr %s289, 8
      %s291 = scalar_lea.vmem %s2, %s290
      %p292 = scmp.lt.s32.totalorder %s21, 7
      %s293 = scalar_select %p292, %s21, 7
      %p294 = scmp.lt.s32.totalorder %s20, 0
      %s295 = scalar_select %p294, %s20, 0
      %s296 = sadd.s32 %s295, %s293
      %s297 = smul.addr %s296, 8
      %s298 = scalar_lea.vmem %s5, %s297
      %p300 = scmp.eq.s32.totalorder %s21, 0
      // Predicated region
      $region41: #{multi_att_rnn_agent_rollout.1} parent=39 // pred_check
        %p301 = pneg %p300
      $region42: #{multi_att_rnn_agent_rollout.1} parent=39 // pred_check_branch
        %303 = sbr.rel (%p301) target = $region44
      $region43: #{multi_att_rnn_agent_rollout.1} parent=39 // pred_region
        %v304 = vld [vmem:[%s291] sm:$0xff]
        %vm305 = vcmask 261120
        %306 = vst.msk [vmem:[#allocation2] sm:$0xff] %vm305, %v304
      $region44: #{multi_att_rnn_agent_rollout.1} parent=39 // pred_fallthru
        _
      %v307 = vld [vmem:[%s279] sm:$0xff]
      %v308 = vld [vmem:[%s287] sm:$0xff]
      %v309 = vld [vmem:[%s287 + $0x8] sm:$0xff]
      %v310 = vld [vmem:[%s287 + $0x10] sm:$0xff]
      %v311 = vld [vmem:[%s287 + $0x18] sm:$0xff]
      %v312 = vld [vmem:[%s287 + $0x20] sm:$0xff]
      %v313 = vld [vmem:[%s287 + $0x28] sm:$0xff]
      %v314 = vld [vmem:[%s287 + $0x30] sm:$0xff]
      %v315 = vld [vmem:[%s287 + $0x38] sm:$0xff]
      %v316 = vld [vmem:[%s287 + $0x40] sm:$0xff]
      %v317 = vld [vmem:[#allocation2] sm:$0xff]
      %v318 = vld [vmem:[%s3] sm:$0xf]
      %v319 = vld [vmem:[%s3 + $0x4] sm:$0x1]
      %v320 = vpack.c.bf16 %v307, %v307
      %v321 = vld [vmem:[%s4] sm:$0x1]
      %v322 = vlaneseq
      %v323 = vshrl.u32 %v322, 7
      %v324 = vsub.s32 0, %v323
      %v325 = vrot.slane %v321, %v324
      %v328 = vunpack.c.l.b16 %v318
      %v329 = vunpack.c.l.b16 %v319
      %v330 = vpack.c.b16 %v329, %v328
      %vm331 = vcmask 80896
      %v333 = vsel %vm331, %v320, 0
      %vm335 = vcmask 1044480
      %v337 = vsel %vm335, %v330, 0
      %339 = vmatprep.subr.bf16.mxu0 0
      %340 = vmatpush1.bf16.msra.mxu0 %v337
      %341 = vmatprep.subr.bf16.mxu0 0
      %342 = vmatpush1.bf16.msra.mxu0 0
      %343 = vmatprep.subr.bf16.mxu0 0
      %344 = vmatpush1.bf16.msra.mxu0 0
      %345 = vmatprep.subr.bf16.mxu0 0
      %346 = vmatpush1.bf16.msra.mxu0 0
      %347 = vmatprep.subr.bf16.mxu0 0
      %348 = vmatpush1.bf16.msra.mxu0 0
      %349 = vmatprep.subr.bf16.mxu0 0
      %350 = vmatpush1.bf16.msra.mxu0 0
      %351 = vmatprep.subr.bf16.mxu0 0
      %352 = vmatpush1.bf16.msra.mxu0 0
      %353 = vmatprep.subr.bf16.mxu0 0
      %354 = vmatpush1.bf16.msra.mxu0 0
      %355 = vmatprep.subr.bf16.mxu0 0
      %356 = vmatpush1.bf16.msra.mxu0 0
      %357 = vmatprep.subr.bf16.mxu0 0
      %358 = vmatpush1.bf16.msra.mxu0 0
      %359 = vmatprep.subr.bf16.mxu0 0
      %360 = vmatpush1.bf16.msra.mxu0 0
      %361 = vmatprep.subr.bf16.mxu0 0
      %362 = vmatpush1.bf16.msra.mxu0 0
      %363 = vmatprep.subr.bf16.mxu0 0
      %364 = vmatpush1.bf16.msra.mxu0 0
      %365 = vmatprep.subr.bf16.mxu0 0
      %366 = vmatpush1.bf16.msra.mxu0 0
      %367 = vmatprep.subr.bf16.mxu0 0
      %368 = vmatpush1.bf16.msra.mxu0 0
      %369 = vmatprep.subr.bf16.mxu0 0
      %370 = vmatpush1.bf16.msra.mxu0 0
      %371 = vmatprep.mubr.bf16.mxu0 0
      %372 = vmatmul.mubr.bf16.gmra.mrb[0].mxu0 %v333
      %v373 = vpop.f32.mrb[0].mxu0
      %v374 = vadd.f32 %v325, %v373
      %v375 = vpop.f32.mrb[0].mxu0
      %v376 = vpop.f32.mrb[0].mxu0
      %v377 = vpop.f32.mrb[0].mxu0
      %378 = vdwg.mxu0
      %v379 = vld [vmem:[%s3 + $0x8] sm:$0xf]
      %v380 = vpack.c.bf16 %v309, %v308
      %v381 = vpack.c.bf16 %v311, %v310
      %v382 = vpack.c.bf16 %v313, %v312
      %v383 = vpack.c.bf16 %v315, %v314
      %v384 = vpack.c.bf16 %v316, %v316
      %vm385 = vcmask 64512
      %v387 = vsel %vm385, %v380, 0
      %v390 = vsel %vm385, %v381, 0
      %v393 = vsel %vm385, %v382, 0
      %v396 = vsel %vm385, %v383, 0
      %v399 = vsel %vm385, %v384, 0
      %vm401 = vcmask 1043456
      %v403 = vsel %vm401, %v379, 0
      %405 = vmatprep.subr.bf16.mxu0 0
      %406 = vmatpush1.bf16.msra.mxu0 %v403
      %407 = vmatprep.subr.bf16.mxu0 0
      %408 = vmatpush1.bf16.msra.mxu0 0
      %409 = vmatprep.subr.bf16.mxu0 0
      %410 = vmatpush1.bf16.msra.mxu0 0
      %411 = vmatprep.subr.bf16.mxu0 0
      %412 = vmatpush1.bf16.msra.mxu0 0
      %413 = vmatprep.subr.bf16.mxu0 0
      %414 = vmatpush1.bf16.msra.mxu0 0
      %415 = vmatprep.subr.bf16.mxu0 0
      %416 = vmatpush1.bf16.msra.mxu0 0
      %417 = vmatprep.subr.bf16.mxu0 0
      %418 = vmatpush1.bf16.msra.mxu0 0
      %419 = vmatprep.subr.bf16.mxu0 0
      %420 = vmatpush1.bf16.msra.mxu0 0
      %421 = vmatprep.subr.bf16.mxu0 0
      %422 = vmatpush1.bf16.msra.mxu0 0
      %423 = vmatprep.subr.bf16.mxu0 0
      %424 = vmatpush1.bf16.msra.mxu0 0
      %425 = vmatprep.subr.bf16.mxu0 0
      %426 = vmatpush1.bf16.msra.mxu0 0
      %427 = vmatprep.subr.bf16.mxu0 0
      %428 = vmatpush1.bf16.msra.mxu0 0
      %429 = vmatprep.subr.bf16.mxu0 0
      %430 = vmatpush1.bf16.msra.mxu0 0
      %431 = vmatprep.subr.bf16.mxu0 0
      %432 = vmatpush1.bf16.msra.mxu0 0
      %433 = vmatprep.subr.bf16.mxu0 0
      %434 = vmatpush1.bf16.msra.mxu0 0
      %435 = vmatprep.subr.bf16.mxu0 0
      %436 = vmatpush1.bf16.msra.mxu0 0
      %437 = vmatprep.mubr.bf16.mxu0 0
      %438 = vmatmul.mubr.bf16.gmra.mrb[0].mxu0 %v387
      %v439 = vpop.f32.mrb[0].mxu0
      %v440 = vadd.f32 0.0, %v439
      %v441 = vpop.f32.mrb[0].mxu0
      %v442 = vpop.f32.mrb[0].mxu0
      %v443 = vadd.f32 0.0, %v442
      %v444 = vpop.f32.mrb[0].mxu0
      %445 = vmatprep.mubr.bf16.mxu0 0
      %446 = vmatmul.mubr.bf16.gmra.mrb[0].mxu0 %v390
      %v447 = vpop.f32.mrb[0].mxu0
      %v448 = vadd.f32 0.0, %v447
      %v449 = vpop.f32.mrb[0].mxu0
      %v450 = vpop.f32.mrb[0].mxu0
      %v451 = vadd.f32 0.0, %v450
      %v452 = vpop.f32.mrb[0].mxu0
      %453 = vmatprep.mubr.bf16.mxu0 0
      %454 = vmatmul.mubr.bf16.gmra.mrb[0].mxu0 %v393
      %v455 = vpop.f32.mrb[0].mxu0
      %v456 = vadd.f32 0.0, %v455
      %v457 = vpop.f32.mrb[0].mxu0
      %v458 = vpop.f32.mrb[0].mxu0
      %v459 = vadd.f32 0.0, %v458
      %v460 = vpop.f32.mrb[0].mxu0
      %461 = vmatprep.mubr.bf16.mxu0 0
      %462 = vmatmul.mubr.bf16.gmra.mrb[0].mxu0 %v396
      %v463 = vpop.f32.mrb[0].mxu0
      %v464 = vadd.f32 0.0, %v463
      %v465 = vpop.f32.mrb[0].mxu0
      %v466 = vpop.f32.mrb[0].mxu0
      %v467 = vadd.f32 0.0, %v466
      %v468 = vpop.f32.mrb[0].mxu0
      %469 = vmatprep.mubr.bf16.mxu0 0
      %470 = vmatmul.mubr.bf16.gmra.mrb[0].mxu0 %v399
      %v471 = vpop.f32.mrb[0].mxu0
      %v472 = vadd.f32 0.0, %v471
      %v473 = vpop.f32.mrb[0].mxu0
      %v474 = vpop.f32.mrb[0].mxu0
      %v475 = vpop.f32.mrb[0].mxu0
      %476 = vdwg.mxu0
      %v477 = vld [vmem:[%s4 + $0x1] sm:$0x1]
      %v478 = vlaneseq
      %v479 = vshrl.u32 %v478, 7
      %v480 = vsub.s32 0, %v479
      %v481 = vrot.slane %v477, %v480
      %v482 = vadd.f32 %v440, %v481
      %v483 = vadd.f32 %v443, %v481
      %v484 = vadd.f32 %v448, %v481
      %v485 = vadd.f32 %v451, %v481
      %v486 = vadd.f32 %v456, %v481
      %v487 = vadd.f32 %v459, %v481
      %v488 = vadd.f32 %v464, %v481
      %v489 = vadd.f32 %v467, %v481
      %v490 = vadd.f32 %v472, %v481
      %500 = vrot.lane.b32.xlu0 %v482, 96
      %v501 = vpop.permute.xlu0 %500
      %502 = vrot.lane.b32.xlu0 %v483, 96
      %v503 = vpop.permute.xlu0 %502
      %504 = vrot.lane.b32.xlu0 %v484, 96
      %v505 = vpop.permute.xlu0 %504
      %506 = vrot.lane.b32.xlu0 %v485, 96
      %v507 = vpop.permute.xlu0 %506
      %508 = vrot.lane.b32.xlu0 %v486, 96
      %v509 = vpop.permute.xlu0 %508
      %510 = vrot.lane.b32.xlu0 %v487, 96
      %v511 = vpop.permute.xlu0 %510
      %512 = vrot.lane.b32.xlu0 %v488, 96
      %v513 = vpop.permute.xlu0 %512
      %514 = vrot.lane.b32.xlu0 %v489, 96
      %v515 = vpop.permute.xlu0 %514
      %516 = vrot.lane.b32.xlu0 %v490, 96
      %v517 = vpop.permute.xlu0 %516
      %v527 = vsel 1, %v482, %v501
      %v528 = vsel 1, %v483, %v503
      %v529 = vsel 1, %v484, %v505
      %v530 = vsel 1, %v485, %v507
      %v531 = vsel 0, %v486, %v509
      %v532 = vsel 0, %v487, %v511
      %v533 = vsel 0, %v488, %v513
      %v534 = vsel 0, %v489, %v515
      %v535 = vsel 0, %v490, %v517
      %v536 = vld [vmem:[%s3 + $0x10] sm:$0xf]
      %v537 = vld [vmem:[%s3 + $0x14] sm:$0xf]
      %v538 = vld [vmem:[%s3 + $0x18] sm:$0xf]
      %v539 = vld [vmem:[%s3 + $0x1c] sm:$0xf]
      %v540 = vpack.c.bf16 %v374, %v374
      %v545 = vunpack.c.l.b16 %v536
      %v546 = vunpack.c.l.b16 %v537
      %v547 = vunpack.c.l.b16 %v538
      %v548 = vunpack.c.l.b16 %v539
      %v549 = vpack.c.b16 %v546, %v545
      %v550 = vpack.c.b16 %v548, %v547
      %vm553 = vcmask 261120
      %v555 = vsel %vm553, %v540, 0
      %557 = vmatprep.subr.bf16.mxu0 0
      %558 = vmatpush1.bf16.msra.mxu0 %v549
      %559 = vmatprep.subr.bf16.mxu0 0
      %560 = vmatpush1.bf16.msra.mxu0 %v550
      %561 = vmatprep.subr.bf16.mxu0 0
      %562 = vmatpush1.bf16.msra.mxu0 0
      %563 = vmatprep.subr.bf16.mxu0 0
      %564 = vmatpush1.bf16.msra.mxu0 0
      %565 = vmatprep.subr.bf16.mxu0 0
      %566 = vmatpush1.bf16.msra.mxu0 0
      %567 = vmatprep.subr.bf16.mxu0 0
      %568 = vmatpush1.bf16.msra.mxu0 0
      %569 = vmatprep.subr.bf16.mxu0 0
      %570 = vmatpush1.bf16.msra.mxu0 0
      %571 = vmatprep.subr.bf16.mxu0 0
      %572 = vmatpush1.bf16.msra.mxu0 0
      %573 = vmatprep.subr.bf16.mxu0 0
      %574 = vmatpush1.bf16.msra.mxu0 0
      %575 = vmatprep.subr.bf16.mxu0 0
      %576 = vmatpush1.bf16.msra.mxu0 0
      %577 = vmatprep.subr.bf16.mxu0 0
      %578 = vmatpush1.bf16.msra.mxu0 0
      %579 = vmatprep.subr.bf16.mxu0 0
      %580 = vmatpush1.bf16.msra.mxu0 0
      %581 = vmatprep.subr.bf16.mxu0 0
      %582 = vmatpush1.bf16.msra.mxu0 0
      %583 = vmatprep.subr.bf16.mxu0 0
      %584 = vmatpush1.bf16.msra.mxu0 0
      %585 = vmatprep.subr.bf16.mxu0 0
      %586 = vmatpush1.bf16.msra.mxu0 0
      %587 = vmatprep.subr.bf16.mxu0 0
      %588 = vmatpush1.bf16.msra.mxu0 0
      %589 = vmatprep.mubr.bf16.mxu0 0
      %590 = vmatmul.mubr.bf16.gmra.mrb[0].mxu0 %v555
      %v591 = vpop.f32.mrb[0].mxu0
      %v592 = vadd.f32 0.0, %v591
      %v593 = vpop.f32.mrb[0].mxu0
      %v594 = vpop.f32.mrb[0].mxu0
      %v595 = vpop.f32.mrb[0].mxu0
      %596 = vdwg.mxu0
      %v597 = vmul.f32 %v592, 0.35355338
      %v598 = vld [vmem:[%s3 + $0x30] sm:$0xf]
      %v599 = vld [vmem:[%s3 + $0x34] sm:$0xf]
      %v600 = vld [vmem:[%s3 + $0x38] sm:$0xf]
      %v601 = vld [vmem:[%s3 + $0x3c] sm:$0xf]
      %v602 = vpack.c.bf16 %v528, %v527
      %v603 = vpack.c.bf16 %v530, %v529
      %v604 = vpack.c.bf16 %v532, %v531
      %v605 = vpack.c.bf16 %v534, %v533
      %v606 = vpack.c.bf16 %v535, %v535
      %v611 = vunpack.c.l.b16 %v598
      %v612 = vunpack.c.l.b16 %v599
      %v613 = vunpack.c.l.b16 %v600
      %v614 = vunpack.c.l.b16 %v601
      %v615 = vpack.c.b16 %v612, %v611
      %v616 = vpack.c.b16 %v614, %v613
      %v620 = vsel %vm553, %v602, 0
      %v623 = vsel %vm553, %v603, 0
      %v626 = vsel %vm553, %v604, 0
      %v629 = vsel %vm553, %v605, 0
      %v632 = vsel %vm553, %v606, 0
      %634 = vmatprep.subr.bf16.mxu0 0
      %635 = vmatpush1.bf16.msra.mxu0 %v615
      %636 = vmatprep.subr.bf16.mxu0 0
      %637 = vmatpush1.bf16.msra.mxu0 %v616
      %638 = vmatprep.subr.bf16.mxu0 0
      %639 = vmatpush1.bf16.msra.mxu0 0
      %640 = vmatprep.subr.bf16.mxu0 0
      %641 = vmatpush1.bf16.msra.mxu0 0
      %642 = vmatprep.subr.bf16.mxu0 0
      %643 = vmatpush1.bf16.msra.mxu0 0
      %644 = vmatprep.subr.bf16.mxu0 0
      %645 = vmatpush1.bf16.msra.mxu0 0
      %646 = vmatprep.subr.bf16.mxu0 0
      %647 = vmatpush1.bf16.msra.mxu0 0
      %648 = vmatprep.subr.bf16.mxu0 0
      %649 = vmatpush1.bf16.msra.mxu0 0
      %650 = vmatprep.subr.bf16.mxu0 0
      %651 = vmatpush1.bf16.msra.mxu0 0
      %652 = vmatprep.subr.bf16.mxu0 0
      %653 = vmatpush1.bf16.msra.mxu0 0
      %654 = vmatprep.subr.bf16.mxu0 0
      %655 = vmatpush1.bf16.msra.mxu0 0
      %656 = vmatprep.subr.bf16.mxu0 0
      %657 = vmatpush1.bf16.msra.mxu0 0
      %658 = vmatprep.subr.bf16.mxu0 0
      %659 = vmatpush1.bf16.msra.mxu0 0
      %660 = vmatprep.subr.bf16.mxu0 0
      %661 = vmatpush1.bf16.msra.mxu0 0
      %662 = vmatprep.subr.bf16.mxu0 0
      %663 = vmatpush1.bf16.msra.mxu0 0
      %664 = vmatprep.subr.bf16.mxu0 0
      %665 = vmatpush1.bf16.msra.mxu0 0
      %666 = vmatprep.mubr.bf16.mxu0 0
      %667 = vmatmul.mubr.bf16.gmra.mrb[0].mxu0 %v620
      %v668 = vpop.f32.mrb[0].mxu0
      %v669 = vadd.f32 0.0, %v668
      %v670 = vpop.f32.mrb[0].mxu0
      %v671 = vpop.f32.mrb[0].mxu0
      %v672 = vadd.f32 0.0, %v671
      %v673 = vpop.f32.mrb[0].mxu0
      %674 = vmatprep.mubr.bf16.mxu0 0
      %675 = vmatmul.mubr.bf16.gmra.mrb[0].mxu0 %v623
      %v676 = vpop.f32.mrb[0].mxu0
      %v677 = vadd.f32 0.0, %v676
      %v678 = vpop.f32.mrb[0].mxu0
      %v679 = vpop.f32.mrb[0].mxu0
      %v680 = vadd.f32 0.0, %v679
      %v681 = vpop.f32.mrb[0].mxu0
      %682 = vmatprep.mubr.bf16.mxu0 0
      %683 = vmatmul.mubr.bf16.gmra.mrb[0].mxu0 %v626
      %v684 = vpop.f32.mrb[0].mxu0
      %v685 = vadd.f32 0.0, %v684
      %v686 = vpop.f32.mrb[0].mxu0
      %v687 = vpop.f32.mrb[0].mxu0
      %v688 = vadd.f32 0.0, %v687
      %v689 = vpop.f32.mrb[0].mxu0
      %690 = vmatprep.mubr.bf16.mxu0 0
      %691 = vmatmul.mubr.bf16.gmra.mrb[0].mxu0 %v629
      %v692 = vpop.f32.mrb[0].mxu0
      %v693 = vadd.f32 0.0, %v692
      %v694 = vpop.f32.mrb[0].mxu0
      %v695 = vpop.f32.mrb[0].mxu0
      %v696 = vadd.f32 0.0, %v695
      %v697 = vpop.f32.mrb[0].mxu0
      %698 = vmatprep.mubr.bf16.mxu0 0
      %699 = vmatmul.mubr.bf16.gmra.mrb[0].mxu0 %v632
      %v700 = vpop.f32.mrb[0].mxu0
      %v701 = vadd.f32 0.0, %v700
      %v702 = vpop.f32.mrb[0].mxu0
      %v703 = vpop.f32.mrb[0].mxu0
      %v704 = vpop.f32.mrb[0].mxu0
      %705 = vdwg.mxu0
      %715 = vrot.lane.b32.xlu0 %v669, 64
      %v716 = vpop.permute.xlu0 %715
      %717 = vrot.lane.b32.xlu0 %v672, 64
      %v718 = vpop.permute.xlu0 %717
      %719 = vrot.lane.b32.xlu0 %v677, 64
      %v720 = vpop.permute.xlu0 %719
      %721 = vrot.lane.b32.xlu0 %v680, 64
      %v722 = vpop.permute.xlu0 %721
      %723 = vrot.lane.b32.xlu0 %v685, 64
      %v724 = vpop.permute.xlu0 %723
      %725 = vrot.lane.b32.xlu0 %v688, 64
      %v726 = vpop.permute.xlu0 %725
      %727 = vrot.lane.b32.xlu0 %v693, 64
      %v728 = vpop.permute.xlu0 %727
      %729 = vrot.lane.b32.xlu0 %v696, 64
      %v730 = vpop.permute.xlu0 %729
      %731 = vrot.lane.b32.xlu0 %v701, 64
      %v732 = vpop.permute.xlu0 %731
      %v742 = vsel 1, %v669, %v716
      %v743 = vsel 1, %v672, %v718
      %v744 = vsel 1, %v677, %v720
      %v745 = vsel 1, %v680, %v722
      %v746 = vsel 0, %v685, %v724
      %v747 = vsel 0, %v688, %v726
      %v748 = vsel 0, %v693, %v728
      %v749 = vsel 0, %v696, %v730
      %v750 = vsel 0, %v701, %v732
      %v751 = vmul.f32 %v597, %v742
      %v752 = vmul.f32 %v597, %v743
      %v753 = vmul.f32 %v597, %v744
      %v754 = vmul.f32 %v597, %v745
      %v755 = vmul.f32 %v597, %v746
      %v756 = vmul.f32 %v597, %v747
      %v757 = vmul.f32 %v597, %v748
      %v758 = vmul.f32 %v597, %v749
      %v759 = vmul.f32 %v597, %v750
      %v760 = vld [vmem:[%s3 + $0xa0] sm:$0xf]
      %v761 = vld [vmem:[%s3 + $0xa4] sm:$0xf]
      %v762 = vld [vmem:[%s3 + $0xa8] sm:$0xf]
      %v763 = vld [vmem:[%s3 + $0xac] sm:$0xf]
      %v764 = vpack.c.bf16 %v752, %v751
      %v765 = vpack.c.bf16 %v754, %v753
      %v766 = vpack.c.bf16 %v756, %v755
      %v767 = vpack.c.bf16 %v758, %v757
      %v768 = vpack.c.bf16 %v759, %v759
      %v773 = vunpack.c.l.b16 %v760
      %v774 = vunpack.c.l.b16 %v761
      %v775 = vunpack.c.l.b16 %v762
      %v776 = vunpack.c.l.b16 %v763
      %v777 = vpack.c.b16 %v774, %v773
      %v778 = vpack.c.b16 %v776, %v775
      %v782 = vsel %vm553, %v764, 0
      %v785 = vsel %vm553, %v765, 0
      %v788 = vsel %vm553, %v766, 0
      %v791 = vsel %vm553, %v767, 0
      %v794 = vsel %vm553, %v768, 0
      %796 = vmatprep.subr.bf16.mxu0 0
      %797 = vmatpush1.bf16.msra.mxu0 %v777
      %798 = vmatprep.subr.bf16.mxu0 0
      %799 = vmatpush1.bf16.msra.mxu0 %v778
      %800 = vmatprep.subr.bf16.mxu0 0
      %801 = vmatpush1.bf16.msra.mxu0 0
      %802 = vmatprep.subr.bf16.mxu0 0
      %803 = vmatpush1.bf16.msra.mxu0 0
      %804 = vmatprep.subr.bf16.mxu0 0
      %805 = vmatpush1.bf16.msra.mxu0 0
      %806 = vmatprep.subr.bf16.mxu0 0
      %807 = vmatpush1.bf16.msra.mxu0 0
      %808 = vmatprep.subr.bf16.mxu0 0
      %809 = vmatpush1.bf16.msra.mxu0 0
      %810 = vmatprep.subr.bf16.mxu0 0
      %811 = vmatpush1.bf16.msra.mxu0 0
      %812 = vmatprep.subr.bf16.mxu0 0
      %813 = vmatpush1.bf16.msra.mxu0 0
      %814 = vmatprep.subr.bf16.mxu0 0
      %815 = vmatpush1.bf16.msra.mxu0 0
      %816 = vmatprep.subr.bf16.mxu0 0
      %817 = vmatpush1.bf16.msra.mxu0 0
      %818 = vmatprep.subr.bf16.mxu0 0
      %819 = vmatpush1.bf16.msra.mxu0 0
      %820 = vmatprep.subr.bf16.mxu0 0
      %821 = vmatpush1.bf16.msra.mxu0 0
      %822 = vmatprep.subr.bf16.mxu0 0
      %823 = vmatpush1.bf16.msra.mxu0 0
      %824 = vmatprep.subr.bf16.mxu0 0
      %825 = vmatpush1.bf16.msra.mxu0 0
      %826 = vmatprep.subr.bf16.mxu0 0
      %827 = vmatpush1.bf16.msra.mxu0 0
      %828 = vmatprep.mubr.bf16.mxu0 0
      %829 = vmatmul.mubr.bf16.gmra.mrb[0].mxu0 %v782
      %v830 = vpop.f32.mrb[0].mxu0
      %v831 = vadd.f32 0.0, %v830
      %v832 = vpop.f32.mrb[0].mxu0
      %v833 = vpop.f32.mrb[0].mxu0
      %v834 = vadd.f32 0.0, %v833
      %v835 = vpop.f32.mrb[0].mxu0
      %836 = vmatprep.mubr.bf16.mxu0 0
      %837 = vmatmul.mubr.bf16.gmra.mrb[0].mxu0 %v785
      %v838 = vpop.f32.mrb[0].mxu0
      %v839 = vadd.f32 0.0, %v838
      %v840 = vpop.f32.mrb[0].mxu0
      %v841 = vpop.f32.mrb[0].mxu0
      %v842 = vadd.f32 0.0, %v841
      %v843 = vpop.f32.mrb[0].mxu0
      %844 = vmatprep.mubr.bf16.mxu0 0
      %845 = vmatmul.mubr.bf16.gmra.mrb[0].mxu0 %v788
      %v846 = vpop.f32.mrb[0].mxu0
      %v847 = vadd.f32 0.0, %v846
      %v848 = vpop.f32.mrb[0].mxu0
      %v849 = vpop.f32.mrb[0].mxu0
      %v850 = vadd.f32 0.0, %v849
      %v851 = vpop.f32.mrb[0].mxu0
      %852 = vmatprep.mubr.bf16.mxu0 0
      %853 = vmatmul.mubr.bf16.gmra.mrb[0].mxu0 %v791
      %v854 = vpop.f32.mrb[0].mxu0
      %v855 = vadd.f32 0.0, %v854
      %v856 = vpop.f32.mrb[0].mxu0
      %v857 = vpop.f32.mrb[0].mxu0
      %v858 = vadd.f32 0.0, %v857
      %v859 = vpop.f32.mrb[0].mxu0
      %860 = vmatprep.mubr.bf16.mxu0 0
      %861 = vmatmul.mubr.bf16.gmra.mrb[0].mxu0 %v794
      %v862 = vpop.f32.mrb[0].mxu0
      %v863 = vadd.f32 0.0, %v862
      %v864 = vpop.f32.mrb[0].mxu0
      %v865 = vpop.f32.mrb[0].mxu0
      %v866 = vpop.f32.mrb[0].mxu0
      %867 = vdwg.mxu0
      %vm868 = vcmask 31744
      %v869 = vsel %vm868, %v831, -inf
      %v870 = vsel %vm868, %v834, -inf
      %v871 = vsel %vm868, %v839, -inf
      %v872 = vsel %vm868, %v842, -inf
      %v873 = vsel %vm868, %v847, -inf
      %v874 = vmax.f32 %v869, %v873
      %v875 = vsel %vm868, %v850, -inf
      %v876 = vmax.f32 %v870, %v875
      %v877 = vsel %vm868, %v855, -inf
      %v878 = vmax.f32 %v871, %v877
      %v879 = vsel %vm868, %v858, -inf
      %v880 = vmax.f32 %v872, %v879
      %v881 = vsel %vm868, %v863, -inf
      %v882 = vmax.f32 %v874, %v881
      %v883 = vmax.f32 %v882, %v876
      %v884 = vmax.f32 %v878, %v880
      %v885 = vmax.f32 %v883, %v884
      %v886 = vsub.f32 %v831, %v885
      %v887 = vsub.f32 %v834, %v885
      %v888 = vsub.f32 %v839, %v885
      %v889 = vsub.f32 %v842, %v885
      %v890 = vsub.f32 %v847, %v885
      %v891 = vsub.f32 %v850, %v885
      %v892 = vsub.f32 %v855, %v885
      %v893 = vsub.f32 %v858, %v885
      %v894 = vsub.f32 %v863, %v885
      %v895 = vmul.f32 %v886, 1.442695
      %v896 = vpow.pop %v895
      %v897 = vmul.f32 %v887, 1.442695
      %v898 = vpow.pop %v897
      %v899 = vmul.f32 %v888, 1.442695
      %v900 = vpow.pop %v899
      %v901 = vmul.f32 %v889, 1.442695
      %v902 = vpow.pop %v901
      %v903 = vmul.f32 %v890, 1.442695
      %v904 = vpow.pop %v903
      %v905 = vmul.f32 %v891, 1.442695
      %v906 = vpow.pop %v905
      %v907 = vmul.f32 %v892, 1.442695
      %v908 = vpow.pop %v907
      %v909 = vmul.f32 %v893, 1.442695
      %v910 = vpow.pop %v909
      %v911 = vmul.f32 %v894, 1.442695
      %v912 = vpow.pop %v911
      %v913 = vsel %vm868, %v896, 0.0
      %v914 = vsel %vm868, %v898, 0.0
      %v915 = vadd.f32 %v913, %v914
      %v916 = vsel %vm868, %v900, 0.0
      %v917 = vadd.f32 %v915, %v916
      %v918 = vsel %vm868, %v902, 0.0
      %v919 = vadd.f32 %v917, %v918
      %v920 = vsel %vm868, %v904, 0.0
      %v921 = vsel %vm868, %v906, 0.0
      %v922 = vadd.f32 %v920, %v921
      %v923 = vsel %vm868, %v908, 0.0
      %v924 = vadd.f32 %v922, %v923
      %v925 = vsel %vm868, %v910, 0.0
      %v926 = vadd.f32 %v924, %v925
      %v927 = vsel %vm868, %v912, 0.0
      %v928 = vadd.f32 %v926, %v927
      %v929 = vrcp.pop %v919
      %v930 = vmul.f32 1.0, %v929
      %v931 = vrcp.pop %v928
      %v932 = vmul.f32 1.0, %v931
      %v933 = vsel 1, %v930, %v932
      %v934 = vsel 0, %v930, %v932
      %v935 = vmul.f32 %v896, %v933
      %v936 = vmul.f32 %v898, %v933
      %v937 = vmul.f32 %v900, %v933
      %v938 = vmul.f32 %v902, %v933
      %v939 = vmul.f32 %v904, %v934
      %v940 = vmul.f32 %v906, %v934
      %v941 = vmul.f32 %v908, %v934
      %v942 = vmul.f32 %v910, %v934
      %v943 = vmul.f32 %v912, %v934
      %v944 = vld [vmem:[%s3 + $0xb0] sm:$0x3]
      %v945 = vpack.c.bf16 %v936, %v935
      %v946 = vpack.c.bf16 %v938, %v937
      %v947 = vpack.c.bf16 %v940, %v939
      %v948 = vpack.c.bf16 %v942, %v941
      %v949 = vpack.c.bf16 %v943, %v943
      %v951 = vsel %vm868, %v945, 0
      %v954 = vsel %vm868, %v946, 0
      %v957 = vsel %vm868, %v947, 0
      %v960 = vsel %vm868, %v948, 0
      %v963 = vsel %vm868, %v949, 0
      %vm965 = vcmask 1041408
      %v967 = vsel %vm965, %v944, 0
      %969 = vmatprep.subr.bf16.mxu0 0
      %970 = vmatpush1.bf16.msra.mxu0 %v967
      %971 = vmatprep.subr.bf16.mxu0 0
      %972 = vmatpush1.bf16.msra.mxu0 0
      %973 = vmatprep.subr.bf16.mxu0 0
      %974 = vmatpush1.bf16.msra.mxu0 0
      %975 = vmatprep.subr.bf16.mxu0 0
      %976 = vmatpush1.bf16.msra.mxu0 0
      %977 = vmatprep.subr.bf16.mxu0 0
      %978 = vmatpush1.bf16.msra.mxu0 0
      %979 = vmatprep.subr.bf16.mxu0 0
      %980 = vmatpush1.bf16.msra.mxu0 0
      %981 = vmatprep.subr.bf16.mxu0 0
      %982 = vmatpush1.bf16.msra.mxu0 0
      %983 = vmatprep.subr.bf16.mxu0 0
      %984 = vmatpush1.bf16.msra.mxu0 0
      %985 = vmatprep.subr.bf16.mxu0 0
      %986 = vmatpush1.bf16.msra.mxu0 0
      %987 = vmatprep.subr.bf16.mxu0 0
      %988 = vmatpush1.bf16.msra.mxu0 0
      %989 = vmatprep.subr.bf16.mxu0 0
      %990 = vmatpush1.bf16.msra.mxu0 0
      %991 = vmatprep.subr.bf16.mxu0 0
      %992 = vmatpush1.bf16.msra.mxu0 0
      %993 = vmatprep.subr.bf16.mxu0 0
      %994 = vmatpush1.bf16.msra.mxu0 0
      %995 = vmatprep.subr.bf16.mxu0 0
      %996 = vmatpush1.bf16.msra.mxu0 0
      %997 = vmatprep.subr.bf16.mxu0 0
      %998 = vmatpush1.bf16.msra.mxu0 0
      %999 = vmatprep.subr.bf16.mxu0 0
      %1000 = vmatpush1.bf16.msra.mxu0 0
      %1001 = vmatprep.mubr.bf16.mxu0 0
      %1002 = vmatmul.mubr.bf16.gmra.mrb[0].mxu0 %v951
      %v1003 = vpop.f32.mrb[0].mxu0
      %v1004 = vadd.f32 0.0, %v1003
      %v1005 = vpop.f32.mrb[0].mxu0
      %v1006 = vpop.f32.mrb[0].mxu0
      %v1007 = vadd.f32 0.0, %v1006
      %v1008 = vpop.f32.mrb[0].mxu0
      %1009 = vmatprep.mubr.bf16.mxu0 0
      %1010 = vmatmul.mubr.bf16.gmra.mrb[0].mxu0 %v954
      %v1011 = vpop.f32.mrb[0].mxu0
      %v1012 = vadd.f32 0.0, %v1011
      %v1013 = vpop.f32.mrb[0].mxu0
      %v1014 = vpop.f32.mrb[0].mxu0
      %v1015 = vadd.f32 0.0, %v1014
      %v1016 = vpop.f32.mrb[0].mxu0
      %1017 = vmatprep.mubr.bf16.mxu0 0
      %1018 = vmatmul.mubr.bf16.gmra.mrb[0].mxu0 %v957
      %v1019 = vpop.f32.mrb[0].mxu0
      %v1020 = vadd.f32 0.0, %v1019
      %v1021 = vpop.f32.mrb[0].mxu0
      %v1022 = vpop.f32.mrb[0].mxu0
      %v1023 = vadd.f32 0.0, %v1022
      %v1024 = vpop.f32.mrb[0].mxu0
      %1025 = vmatprep.mubr.bf16.mxu0 0
      %1026 = vmatmul.mubr.bf16.gmra.mrb[0].mxu0 %v960
      %v1027 = vpop.f32.mrb[0].mxu0
      %v1028 = vadd.f32 0.0, %v1027
      %v1029 = vpop.f32.mrb[0].mxu0
      %v1030 = vpop.f32.mrb[0].mxu0
      %v1031 = vadd.f32 0.0, %v1030
      %v1032 = vpop.f32.mrb[0].mxu0
      %1033 = vmatprep.mubr.bf16.mxu0 0
      %1034 = vmatmul.mubr.bf16.gmra.mrb[0].mxu0 %v963
      %v1035 = vpop.f32.mrb[0].mxu0
      %v1036 = vadd.f32 0.0, %v1035
      %v1037 = vpop.f32.mrb[0].mxu0
      %v1038 = vpop.f32.mrb[0].mxu0
      %v1039 = vpop.f32.mrb[0].mxu0
      %1040 = vdwg.mxu0
      %1050 = vrot.lane.b32.xlu0 %v742, 96
      %v1051 = vpop.permute.xlu0 %1050
      %1052 = vrot.lane.b32.xlu0 %v743, 96
      %v1053 = vpop.permute.xlu0 %1052
      %1054 = vrot.lane.b32.xlu0 %v744, 96
      %v1055 = vpop.permute.xlu0 %1054
      %1056 = vrot.lane.b32.xlu0 %v745, 96
      %v1057 = vpop.permute.xlu0 %1056
      %1058 = vrot.lane.b32.xlu0 %v746, 96
      %v1059 = vpop.permute.xlu0 %1058
      %1060 = vrot.lane.b32.xlu0 %v747, 96
      %v1061 = vpop.permute.xlu0 %1060
      %1062 = vrot.lane.b32.xlu0 %v748, 96
      %v1063 = vpop.permute.xlu0 %1062
      %1064 = vrot.lane.b32.xlu0 %v749, 96
      %v1065 = vpop.permute.xlu0 %1064
      %1066 = vrot.lane.b32.xlu0 %v750, 96
      %v1067 = vpop.permute.xlu0 %1066
      %v1077 = vmul.f32 %v1004, %v1051
      %v1078 = vmul.f32 %v1007, %v1053
      %v1079 = vmul.f32 %v1012, %v1055
      %v1080 = vmul.f32 %v1015, %v1057
      %v1081 = vmul.f32 %v1020, %v1059
      %v1082 = vmul.f32 %v1023, %v1061
      %v1083 = vmul.f32 %v1028, %v1063
      %v1084 = vmul.f32 %v1031, %v1065
      %v1085 = vmul.f32 %v1036, %v1067
      %v1086 = vsel %vm553, %v1077, 0.0
      %v1087 = vsel %vm553, %v1078, 0.0
      %v1088 = vadd.f32 %v1086, %v1087
      %v1089 = vsel %vm553, %v1079, 0.0
      %v1090 = vadd.f32 %v1088, %v1089
      %v1091 = vsel %vm553, %v1080, 0.0
      %v1092 = vadd.f32 %v1090, %v1091
      %v1093 = vsel %vm553, %v1081, 0.0
      %v1094 = vadd.f32 %v1092, %v1093
      %v1095 = vsel %vm553, %v1082, 0.0
      %v1096 = vadd.f32 %v1094, %v1095
      %v1097 = vsel %vm553, %v1083, 0.0
      %v1098 = vadd.f32 %v1096, %v1097
      %v1099 = vsel %vm553, %v1084, 0.0
      %v1100 = vadd.f32 %v1098, %v1099
      %v1101 = vsel %vm553, %v1085, 0.0
      %v1102 = vadd.f32 %v1100, %v1101
      %v1103 = vld [vmem:[%s3 + $0x50] sm:$0xf]
      %v1104 = vld [vmem:[%s3 + $0x54] sm:$0xf]
      %v1105 = vld [vmem:[%s3 + $0x58] sm:$0xf]
      %v1106 = vld [vmem:[%s3 + $0x5c] sm:$0xf]
      %v1107 = vpack.c.bf16 %v1102, %v1102
      %v1112 = vunpack.c.l.b16 %v1103
      %v1113 = vunpack.c.l.b16 %v1104
      %v1114 = vunpack.c.l.b16 %v1105
      %v1115 = vunpack.c.l.b16 %v1106
      %v1116 = vpack.c.b16 %v1113, %v1112
      %v1117 = vpack.c.b16 %v1115, %v1114
      %v1121 = vsel %vm553, %v1107, 0
      %1123 = vmatprep.subr.bf16.mxu0 0
      %1124 = vmatpush1.bf16.msra.mxu0 %v1116
      %1125 = vmatprep.subr.bf16.mxu0 0
      %1126 = vmatpush1.bf16.msra.mxu0 %v1117
      %1127 = vmatprep.subr.bf16.mxu0 0
      %1128 = vmatpush1.bf16.msra.mxu0 0
      %1129 = vmatprep.subr.bf16.mxu0 0
      %1130 = vmatpush1.bf16.msra.mxu0 0
      %1131 = vmatprep.subr.bf16.mxu0 0
      %1132 = vmatpush1.bf16.msra.mxu0 0
      %1133 = vmatprep.subr.bf16.mxu0 0
      %1134 = vmatpush1.bf16.msra.mxu0 0
      %1135 = vmatprep.subr.bf16.mxu0 0
      %1136 = vmatpush1.bf16.msra.mxu0 0
      %1137 = vmatprep.subr.bf16.mxu0 0
      %1138 = vmatpush1.bf16.msra.mxu0 0
      %1139 = vmatprep.subr.bf16.mxu0 0
      %1140 = vmatpush1.bf16.msra.mxu0 0
      %1141 = vmatprep.subr.bf16.mxu0 0
      %1142 = vmatpush1.bf16.msra.mxu0 0
      %1143 = vmatprep.subr.bf16.mxu0 0
      %1144 = vmatpush1.bf16.msra.mxu0 0
      %1145 = vmatprep.subr.bf16.mxu0 0
      %1146 = vmatpush1.bf16.msra.mxu0 0
      %1147 = vmatprep.subr.bf16.mxu0 0
      %1148 = vmatpush1.bf16.msra.mxu0 0
      %1149 = vmatprep.subr.bf16.mxu0 0
      %1150 = vmatpush1.bf16.msra.mxu0 0
      %1151 = vmatprep.subr.bf16.mxu0 0
      %1152 = vmatpush1.bf16.msra.mxu0 0
      %1153 = vmatprep.subr.bf16.mxu0 0
      %1154 = vmatpush1.bf16.msra.mxu0 0
      %1155 = vmatprep.mubr.bf16.mxu0 0
      %1156 = vmatmul.mubr.bf16.gmra.mrb[0].mxu0 %v1121
      %v1157 = vpop.f32.mrb[0].mxu0
      %v1158 = vadd.f32 0.0, %v1157
      %v1159 = vpop.f32.mrb[0].mxu0
      %v1160 = vpop.f32.mrb[0].mxu0
      %v1161 = vpop.f32.mrb[0].mxu0
      %1162 = vdwg.mxu0
      %v1163 = vadd.f32 %v374, %v1158
      %v1164 = vld [vmem:[%s4 + $0x2] sm:$0x1]
      %v1165 = vlaneseq
      %v1166 = vshrl.u32 %v1165, 7
      %v1167 = vsub.s32 0, %v1166
      %v1168 = vrot.slane %v1164, %v1167
      %v1169 = vadd.f32 %v1163, %v1168
      %v1170 = vld [vmem:[%s3 + $0x20] sm:$0xf]
      %v1171 = vld [vmem:[%s3 + $0x24] sm:$0xf]
      %v1172 = vld [vmem:[%s3 + $0x28] sm:$0xf]
      %v1173 = vld [vmem:[%s3 + $0x2c] sm:$0xf]
      %v1174 = vpack.c.bf16 %v1169, %v1169
      %v1179 = vunpack.c.l.b16 %v1170
      %v1180 = vunpack.c.l.b16 %v1171
      %v1181 = vunpack.c.l.b16 %v1172
      %v1182 = vunpack.c.l.b16 %v1173
      %v1183 = vpack.c.b16 %v1180, %v1179
      %v1184 = vpack.c.b16 %v1182, %v1181
      %v1188 = vsel %vm553, %v1174, 0
      %1190 = vmatprep.subr.bf16.mxu0 0
      %1191 = vmatpush1.bf16.msra.mxu0 %v1183
      %1192 = vmatprep.subr.bf16.mxu0 0
      %1193 = vmatpush1.bf16.msra.mxu0 %v1184
      %1194 = vmatprep.subr.bf16.mxu0 0
      %1195 = vmatpush1.bf16.msra.mxu0 0
      %1196 = vmatprep.subr.bf16.mxu0 0
      %1197 = vmatpush1.bf16.msra.mxu0 0
      %1198 = vmatprep.subr.bf16.mxu0 0
      %1199 = vmatpush1.bf16.msra.mxu0 0
      %1200 = vmatprep.subr.bf16.mxu0 0
      %1201 = vmatpush1.bf16.msra.mxu0 0
      %1202 = vmatprep.subr.bf16.mxu0 0
      %1203 = vmatpush1.bf16.msra.mxu0 0
      %1204 = vmatprep.subr.bf16.mxu0 0
      %1205 = vmatpush1.bf16.msra.mxu0 0
      %1206 = vmatprep.subr.bf16.mxu0 0
      %1207 = vmatpush1.bf16.msra.mxu0 0
      %1208 = vmatprep.subr.bf16.mxu0 0
      %1209 = vmatpush1.bf16.msra.mxu0 0
      %1210 = vmatprep.subr.bf16.mxu0 0
      %1211 = vmatpush1.bf16.msra.mxu0 0
      %1212 = vmatprep.subr.bf16.mxu0 0
      %1213 = vmatpush1.bf16.msra.mxu0 0
      %1214 = vmatprep.subr.bf16.mxu0 0
      %1215 = vmatpush1.bf16.msra.mxu0 0
      %1216 = vmatprep.subr.bf16.mxu0 0
      %1217 = vmatpush1.bf16.msra.mxu0 0
      %1218 = vmatprep.subr.bf16.mxu0 0
      %1219 = vmatpush1.bf16.msra.mxu0 0
      %1220 = vmatprep.subr.bf16.mxu0 0
      %1221 = vmatpush1.bf16.msra.mxu0 0
      %1222 = vmatprep.mubr.bf16.mxu0 0
      %1223 = vmatmul.mubr.bf16.gmra.mrb[0].mxu0 %v1188
      %v1224 = vpop.f32.mrb[0].mxu0
      %v1225 = vadd.f32 0.0, %v1224
      %v1226 = vpop.f32.mrb[0].mxu0
      %v1227 = vpop.f32.mrb[0].mxu0
      %v1228 = vpop.f32.mrb[0].mxu0
      %1229 = vdwg.mxu0
      %v1230 = vmul.f32 %v1225, 0.35355338
      %v1231 = vld [vmem:[%s3 + $0x40] sm:$0xf]
      %v1232 = vld [vmem:[%s3 + $0x44] sm:$0xf]
      %v1233 = vld [vmem:[%s3 + $0x48] sm:$0xf]
      %v1234 = vld [vmem:[%s3 + $0x4c] sm:$0xf]
      %v1239 = vunpack.c.l.b16 %v1231
      %v1240 = vunpack.c.l.b16 %v1232
      %v1241 = vunpack.c.l.b16 %v1233
      %v1242 = vunpack.c.l.b16 %v1234
      %v1243 = vpack.c.b16 %v1240, %v1239
      %v1244 = vpack.c.b16 %v1242, %v1241
      %1247 = vmatprep.subr.bf16.mxu0 0
      %1248 = vmatpush1.bf16.msra.mxu0 %v1243
      %1249 = vmatprep.subr.bf16.mxu0 0
      %1250 = vmatpush1.bf16.msra.mxu0 %v1244
      %1251 = vmatprep.subr.bf16.mxu0 0
      %1252 = vmatpush1.bf16.msra.mxu0 0
      %1253 = vmatprep.subr.bf16.mxu0 0
      %1254 = vmatpush1.bf16.msra.mxu0 0
      %1255 = vmatprep.subr.bf16.mxu0 0
      %1256 = vmatpush1.bf16.msra.mxu0 0
      %1257 = vmatprep.subr.bf16.mxu0 0
      %1258 = vmatpush1.bf16.msra.mxu0 0
      %1259 = vmatprep.subr.bf16.mxu0 0
      %1260 = vmatpush1.bf16.msra.mxu0 0
      %1261 = vmatprep.subr.bf16.mxu0 0
      %1262 = vmatpush1.bf16.msra.mxu0 0
      %1263 = vmatprep.subr.bf16.mxu0 0
      %1264 = vmatpush1.bf16.msra.mxu0 0
      %1265 = vmatprep.subr.bf16.mxu0 0
      %1266 = vmatpush1.bf16.msra.mxu0 0
      %1267 = vmatprep.subr.bf16.mxu0 0
      %1268 = vmatpush1.bf16.msra.mxu0 0
      %1269 = vmatprep.subr.bf16.mxu0 0
      %1270 = vmatpush1.bf16.msra.mxu0 0
      %1271 = vmatprep.subr.bf16.mxu0 0
      %1272 = vmatpush1.bf16.msra.mxu0 0
      %1273 = vmatprep.subr.bf16.mxu0 0
      %1274 = vmatpush1.bf16.msra.mxu0 0
      %1275 = vmatprep.subr.bf16.mxu0 0
      %1276 = vmatpush1.bf16.msra.mxu0 0
      %1277 = vmatprep.subr.bf16.mxu0 0
      %1278 = vmatpush1.bf16.msra.mxu0 0
      %1279 = vmatprep.mubr.bf16.mxu0 0
      %1280 = vmatmul.mubr.bf16.gmra.mrb[0].mxu0 %v620
      %v1281 = vpop.f32.mrb[0].mxu0
      %v1282 = vadd.f32 0.0, %v1281
      %v1283 = vpop.f32.mrb[0].mxu0
      %v1284 = vpop.f32.mrb[0].mxu0
      %v1285 = vadd.f32 0.0, %v1284
      %v1286 = vpop.f32.mrb[0].mxu0
      %1287 = vmatprep.mubr.bf16.mxu0 0
      %1288 = vmatmul.mubr.bf16.gmra.mrb[0].mxu0 %v623
      %v1289 = vpop.f32.mrb[0].mxu0
      %v1290 = vadd.f32 0.0, %v1289
      %v1291 = vpop.f32.mrb[0].mxu0
      %v1292 = vpop.f32.mrb[0].mxu0
      %v1293 = vadd.f32 0.0, %v1292
      %v1294 = vpop.f32.mrb[0].mxu0
      %1295 = vmatprep.mubr.bf16.mxu0 0
      %1296 = vmatmul.mubr.bf16.gmra.mrb[0].mxu0 %v626
      %v1297 = vpop.f32.mrb[0].mxu0
      %v1298 = vadd.f32 0.0, %v1297
      %v1299 = vpop.f32.mrb[0].mxu0
      %v1300 = vpop.f32.mrb[0].mxu0
      %v1301 = vadd.f32 0.0, %v1300
      %v1302 = vpop.f32.mrb[0].mxu0
      %1303 = vmatprep.mubr.bf16.mxu0 0
      %1304 = vmatmul.mubr.bf16.gmra.mrb[0].mxu0 %v629
      %v1305 = vpop.f32.mrb[0].mxu0
      %v1306 = vadd.f32 0.0, %v1305
      %v1307 = vpop.f32.mrb[0].mxu0
      %v1308 = vpop.f32.mrb[0].mxu0
      %v1309 = vadd.f32 0.0, %v1308
      %v1310 = vpop.f32.mrb[0].mxu0
      %1311 = vmatprep.mubr.bf16.mxu0 0
      %1312 = vmatmul.mubr.bf16.gmra.mrb[0].mxu0 %v632
      %v1313 = vpop.f32.mrb[0].mxu0
      %v1314 = vadd.f32 0.0, %v1313
      %v1315 = vpop.f32.mrb[0].mxu0
      %v1316 = vpop.f32.mrb[0].mxu0
      %v1317 = vpop.f32.mrb[0].mxu0
      %1318 = vdwg.mxu0
      %1328 = vrot.lane.b32.xlu0 %v1282, 64
      %v1329 = vpop.permute.xlu0 %1328
      %1330 = vrot.lane.b32.xlu0 %v1285, 64
      %v1331 = vpop.permute.xlu0 %1330
      %1332 = vrot.lane.b32.xlu0 %v1290, 64
      %v1333 = vpop.permute.xlu0 %1332
      %1334 = vrot.lane.b32.xlu0 %v1293, 64
      %v1335 = vpop.permute.xlu0 %1334
      %1336 = vrot.lane.b32.xlu0 %v1298, 64
      %v1337 = vpop.permute.xlu0 %1336
      %1338 = vrot.lane.b32.xlu0 %v1301, 64
      %v1339 = vpop.permute.xlu0 %1338
      %1340 = vrot.lane.b32.xlu0 %v1306, 64
      %v1341 = vpop.permute.xlu0 %1340
      %1342 = vrot.lane.b32.xlu0 %v1309, 64
      %v1343 = vpop.permute.xlu0 %1342
      %1344 = vrot.lane.b32.xlu0 %v1314, 64
      %v1345 = vpop.permute.xlu0 %1344
      %v1355 = vsel 1, %v1282, %v1329
      %v1356 = vsel 1, %v1285, %v1331
      %v1357 = vsel 1, %v1290, %v1333
      %v1358 = vsel 1, %v1293, %v1335
      %v1359 = vsel 0, %v1298, %v1337
      %v1360 = vsel 0, %v1301, %v1339
      %v1361 = vsel 0, %v1306, %v1341
      %v1362 = vsel 0, %v1309, %v1343
      %v1363 = vsel 0, %v1314, %v1345
      %v1364 = vmul.f32 %v1230, %v1355
      %v1365 = vmul.f32 %v1230, %v1356
      %v1366 = vmul.f32 %v1230, %v1357
      %v1367 = vmul.f32 %v1230, %v1358
      %v1368 = vmul.f32 %v1230, %v1359
      %v1369 = vmul.f32 %v1230, %v1360
      %v1370 = vmul.f32 %v1230, %v1361
      %v1371 = vmul.f32 %v1230, %v1362
      %v1372 = vmul.f32 %v1230, %v1363
      %v1373 = vpack.c.bf16 %v1365, %v1364
      %v1374 = vpack.c.bf16 %v1367, %v1366
      %v1375 = vpack.c.bf16 %v1369, %v1368
      %v1376 = vpack.c.bf16 %v1371, %v1370
      %v1377 = vpack.c.bf16 %v1372, %v1372
      %v1379 = vsel %vm553, %v1373, 0
      %v1382 = vsel %vm553, %v1374, 0
      %v1385 = vsel %vm553, %v1375, 0
      %v1388 = vsel %vm553, %v1376, 0
      %v1391 = vsel %vm553, %v1377, 0
      %1393 = vmatprep.subr.bf16.mxu0 0
      %1394 = vmatpush1.bf16.msra.mxu0 %v777
      %1395 = vmatprep.subr.bf16.mxu0 0
      %1396 = vmatpush1.bf16.msra.mxu0 %v778
      %1397 = vmatprep.subr.bf16.mxu0 0
      %1398 = vmatpush1.bf16.msra.mxu0 0
      %1399 = vmatprep.subr.bf16.mxu0 0
      %1400 = vmatpush1.bf16.msra.mxu0 0
      %1401 = vmatprep.subr.bf16.mxu0 0
      %1402 = vmatpush1.bf16.msra.mxu0 0
      %1403 = vmatprep.subr.bf16.mxu0 0
      %1404 = vmatpush1.bf16.msra.mxu0 0
      %1405 = vmatprep.subr.bf16.mxu0 0
      %1406 = vmatpush1.bf16.msra.mxu0 0
      %1407 = vmatprep.subr.bf16.mxu0 0
      %1408 = vmatpush1.bf16.msra.mxu0 0
      %1409 = vmatprep.subr.bf16.mxu0 0
      %1410 = vmatpush1.bf16.msra.mxu0 0
      %1411 = vmatprep.subr.bf16.mxu0 0
      %1412 = vmatpush1.bf16.msra.mxu0 0
      %1413 = vmatprep.subr.bf16.mxu0 0
      %1414 = vmatpush1.bf16.msra.mxu0 0
      %1415 = vmatprep.subr.bf16.mxu0 0
      %1416 = vmatpush1.bf16.msra.mxu0 0
      %1417 = vmatprep.subr.bf16.mxu0 0
      %1418 = vmatpush1.bf16.msra.mxu0 0
      %1419 = vmatprep.subr.bf16.mxu0 0
      %1420 = vmatpush1.bf16.msra.mxu0 0
      %1421 = vmatprep.subr.bf16.mxu0 0
      %1422 = vmatpush1.bf16.msra.mxu0 0
      %1423 = vmatprep.subr.bf16.mxu0 0
      %1424 = vmatpush1.bf16.msra.mxu0 0
      %1425 = vmatprep.mubr.bf16.mxu0 0
      %1426 = vmatmul.mubr.bf16.gmra.mrb[0].mxu0 %v1379
      %v1427 = vpop.f32.mrb[0].mxu0
      %v1428 = vadd.f32 0.0, %v1427
      %v1429 = vpop.f32.mrb[0].mxu0
      %v1430 = vpop.f32.mrb[0].mxu0
      %v1431 = vadd.f32 0.0, %v1430
      %v1432 = vpop.f32.mrb[0].mxu0
      %1433 = vmatprep.mubr.bf16.mxu0 0
      %1434 = vmatmul.mubr.bf16.gmra.mrb[0].mxu0 %v1382
      %v1435 = vpop.f32.mrb[0].mxu0
      %v1436 = vadd.f32 0.0, %v1435
      %v1437 = vpop.f32.mrb[0].mxu0
      %v1438 = vpop.f32.mrb[0].mxu0
      %v1439 = vadd.f32 0.0, %v1438
      %v1440 = vpop.f32.mrb[0].mxu0
      %1441 = vmatprep.mubr.bf16.mxu0 0
      %1442 = vmatmul.mubr.bf16.gmra.mrb[0].mxu0 %v1385
      %v1443 = vpop.f32.mrb[0].mxu0
      %v1444 = vadd.f32 0.0, %v1443
      %v1445 = vpop.f32.mrb[0].mxu0
      %v1446 = vpop.f32.mrb[0].mxu0
      %v1447 = vadd.f32 0.0, %v1446
      %v1448 = vpop.f32.mrb[0].mxu0
      %1449 = vmatprep.mubr.bf16.mxu0 0
      %1450 = vmatmul.mubr.bf16.gmra.mrb[0].mxu0 %v1388
      %v1451 = vpop.f32.mrb[0].mxu0
      %v1452 = vadd.f32 0.0, %v1451
      %v1453 = vpop.f32.mrb[0].mxu0
      %v1454 = vpop.f32.mrb[0].mxu0
      %v1455 = vadd.f32 0.0, %v1454
      %v1456 = vpop.f32.mrb[0].mxu0
      %1457 = vmatprep.mubr.bf16.mxu0 0
      %1458 = vmatmul.mubr.bf16.gmra.mrb[0].mxu0 %v1391
      %v1459 = vpop.f32.mrb[0].mxu0
      %v1460 = vadd.f32 0.0, %v1459
      %v1461 = vpop.f32.mrb[0].mxu0
      %v1462 = vpop.f32.mrb[0].mxu0
      %v1463 = vpop.f32.mrb[0].mxu0
      %1464 = vdwg.mxu0
      %v1465 = vsel %vm868, %v1428, -inf
      %v1466 = vsel %vm868, %v1431, -inf
      %v1467 = vsel %vm868, %v1436, -inf
      %v1468 = vsel %vm868, %v1439, -inf
      %v1469 = vsel %vm868, %v1444, -inf
      %v1470 = vmax.f32 %v1465, %v1469
      %v1471 = vsel %vm868, %v1447, -inf
      %v1472 = vmax.f32 %v1466, %v1471
      %v1473 = vsel %vm868, %v1452, -inf
      %v1474 = vmax.f32 %v1467, %v1473
      %v1475 = vsel %vm868, %v1455, -inf
      %v1476 = vmax.f32 %v1468, %v1475
      %v1477 = vsel %vm868, %v1460, -inf
      %v1478 = vmax.f32 %v1470, %v1477
      %v1479 = vmax.f32 %v1478, %v1472
      %v1480 = vmax.f32 %v1474, %v1476
      %v1481 = vmax.f32 %v1479, %v1480
      %v1482 = vsub.f32 %v1428, %v1481
      %v1483 = vsub.f32 %v1431, %v1481
      %v1484 = vsub.f32 %v1436, %v1481
      %v1485 = vsub.f32 %v1439, %v1481
      %v1486 = vsub.f32 %v1444, %v1481
      %v1487 = vsub.f32 %v1447, %v1481
      %v1488 = vsub.f32 %v1452, %v1481
      %v1489 = vsub.f32 %v1455, %v1481
      %v1490 = vsub.f32 %v1460, %v1481
      %v1491 = vmul.f32 %v1482, 1.442695
      %v1492 = vpow.pop %v1491
      %v1493 = vmul.f32 %v1483, 1.442695
      %v1494 = vpow.pop %v1493
      %v1495 = vmul.f32 %v1484, 1.442695
      %v1496 = vpow.pop %v1495
      %v1497 = vmul.f32 %v1485, 1.442695
      %v1498 = vpow.pop %v1497
      %v1499 = vmul.f32 %v1486, 1.442695
      %v1500 = vpow.pop %v1499
      %v1501 = vmul.f32 %v1487, 1.442695
      %v1502 = vpow.pop %v1501
      %v1503 = vmul.f32 %v1488, 1.442695
      %v1504 = vpow.pop %v1503
      %v1505 = vmul.f32 %v1489, 1.442695
      %v1506 = vpow.pop %v1505
      %v1507 = vmul.f32 %v1490, 1.442695
      %v1508 = vpow.pop %v1507
      %v1509 = vsel %vm868, %v1492, 0.0
      %v1510 = vsel %vm868, %v1494, 0.0
      %v1511 = vadd.f32 %v1509, %v1510
      %v1512 = vsel %vm868, %v1496, 0.0
      %v1513 = vadd.f32 %v1511, %v1512
      %v1514 = vsel %vm868, %v1498, 0.0
      %v1515 = vadd.f32 %v1513, %v1514
      %v1516 = vsel %vm868, %v1500, 0.0
      %v1517 = vsel %vm868, %v1502, 0.0
      %v1518 = vadd.f32 %v1516, %v1517
      %v1519 = vsel %vm868, %v1504, 0.0
      %v1520 = vadd.f32 %v1518, %v1519
      %v1521 = vsel %vm868, %v1506, 0.0
      %v1522 = vadd.f32 %v1520, %v1521
      %v1523 = vsel %vm868, %v1508, 0.0
      %v1524 = vadd.f32 %v1522, %v1523
      %v1525 = vrcp.pop %v1515
      %v1526 = vmul.f32 1.0, %v1525
      %v1527 = vrcp.pop %v1524
      %v1528 = vmul.f32 1.0, %v1527
      %v1529 = vsel 1, %v1526, %v1528
      %v1530 = vsel 0, %v1526, %v1528
      %v1531 = vmul.f32 %v1492, %v1529
      %v1532 = vmul.f32 %v1494, %v1529
      %v1533 = vmul.f32 %v1496, %v1529
      %v1534 = vmul.f32 %v1498, %v1529
      %v1535 = vmul.f32 %v1500, %v1530
      %v1536 = vmul.f32 %v1502, %v1530
      %v1537 = vmul.f32 %v1504, %v1530
      %v1538 = vmul.f32 %v1506, %v1530
      %v1539 = vmul.f32 %v1508, %v1530
      %v1540 = vpack.c.bf16 %v1532, %v1531
      %v1541 = vpack.c.bf16 %v1534, %v1533
      %v1542 = vpack.c.bf16 %v1536, %v1535
      %v1543 = vpack.c.bf16 %v1538, %v1537
      %v1544 = vpack.c.bf16 %v1539, %v1539
      %v1546 = vsel %vm868, %v1540, 0
      %v1549 = vsel %vm868, %v1541, 0
      %v1552 = vsel %vm868, %v1542, 0
      %v1555 = vsel %vm868, %v1543, 0
      %v1558 = vsel %vm868, %v1544, 0
      %1560 = vmatprep.subr.bf16.mxu0 0
      %1561 = vmatpush1.bf16.msra.mxu0 %v967
      %1562 = vmatprep.subr.bf16.mxu0 0
      %1563 = vmatpush1.bf16.msra.mxu0 0
      %1564 = vmatprep.subr.bf16.mxu0 0
      %1565 = vmatpush1.bf16.msra.mxu0 0
      %1566 = vmatprep.subr.bf16.mxu0 0
      %1567 = vmatpush1.bf16.msra.mxu0 0
      %1568 = vmatprep.subr.bf16.mxu0 0
      %1569 = vmatpush1.bf16.msra.mxu0 0
      %1570 = vmatprep.subr.bf16.mxu0 0
      %1571 = vmatpush1.bf16.msra.mxu0 0
      %1572 = vmatprep.subr.bf16.mxu0 0
      %1573 = vmatpush1.bf16.msra.mxu0 0
      %1574 = vmatprep.subr.bf16.mxu0 0
      %1575 = vmatpush1.bf16.msra.mxu0 0
      %1576 = vmatprep.subr.bf16.mxu0 0
      %1577 = vmatpush1.bf16.msra.mxu0 0
      %1578 = vmatprep.subr.bf16.mxu0 0
      %1579 = vmatpush1.bf16.msra.mxu0 0
      %1580 = vmatprep.subr.bf16.mxu0 0
      %1581 = vmatpush1.bf16.msra.mxu0 0
      %1582 = vmatprep.subr.bf16.mxu0 0
      %1583 = vmatpush1.bf16.msra.mxu0 0
      %1584 = vmatprep.subr.bf16.mxu0 0
      %1585 = vmatpush1.bf16.msra.mxu0 0
      %1586 = vmatprep.subr.bf16.mxu0 0
      %1587 = vmatpush1.bf16.msra.mxu0 0
      %1588 = vmatprep.subr.bf16.mxu0 0
      %1589 = vmatpush1.bf16.msra.mxu0 0
      %1590 = vmatprep.subr.bf16.mxu0 0
      %1591 = vmatpush1.bf16.msra.mxu0 0
      %1592 = vmatprep.mubr.bf16.mxu0 0
      %1593 = vmatmul.mubr.bf16.gmra.mrb[0].mxu0 %v1546
      %v1594 = vpop.f32.mrb[0].mxu0
      %v1595 = vadd.f32 0.0, %v1594
      %v1596 = vpop.f32.mrb[0].mxu0
      %v1597 = vpop.f32.mrb[0].mxu0
      %v1598 = vadd.f32 0.0, %v1597
      %v1599 = vpop.f32.mrb[0].mxu0
      %1600 = vmatprep.mubr.bf16.mxu0 0
      %1601 = vmatmul.mubr.bf16.gmra.mrb[0].mxu0 %v1549
      %v1602 = vpop.f32.mrb[0].mxu0
      %v1603 = vadd.f32 0.0, %v1602
      %v1604 = vpop.f32.mrb[0].mxu0
      %v1605 = vpop.f32.mrb[0].mxu0
      %v1606 = vadd.f32 0.0, %v1605
      %v1607 = vpop.f32.mrb[0].mxu0
      %1608 = vmatprep.mubr.bf16.mxu0 0
      %1609 = vmatmul.mubr.bf16.gmra.mrb[0].mxu0 %v1552
      %v1610 = vpop.f32.mrb[0].mxu0
      %v1611 = vadd.f32 0.0, %v1610
      %v1612 = vpop.f32.mrb[0].mxu0
      %v1613 = vpop.f32.mrb[0].mxu0
      %v1614 = vadd.f32 0.0, %v1613
      %v1615 = vpop.f32.mrb[0].mxu0
      %1616 = vmatprep.mubr.bf16.mxu0 0
      %1617 = vmatmul.mubr.bf16.gmra.mrb[0].mxu0 %v1555
      %v1618 = vpop.f32.mrb[0].mxu0
      %v1619 = vadd.f32 0.0, %v1618
      %v1620 = vpop.f32.mrb[0].mxu0
      %v1621 = vpop.f32.mrb[0].mxu0
      %v1622 = vadd.f32 0.0, %v1621
      %v1623 = vpop.f32.mrb[0].mxu0
      %1624 = vmatprep.mubr.bf16.mxu0 0
      %1625 = vmatmul.mubr.bf16.gmra.mrb[0].mxu0 %v1558
      %v1626 = vpop.f32.mrb[0].mxu0
      %v1627 = vadd.f32 0.0, %v1626
      %v1628 = vpop.f32.mrb[0].mxu0
      %v1629 = vpop.f32.mrb[0].mxu0
      %v1630 = vpop.f32.mrb[0].mxu0
      %1631 = vdwg.mxu0
      %1641 = vrot.lane.b32.xlu0 %v1355, 96
      %v1642 = vpop.permute.xlu0 %1641
      %1643 = vrot.lane.b32.xlu0 %v1356, 96
      %v1644 = vpop.permute.xlu0 %1643
      %1645 = vrot.lane.b32.xlu0 %v1357, 96
      %v1646 = vpop.permute.xlu0 %1645
      %1647 = vrot.lane.b32.xlu0 %v1358, 96
      %v1648 = vpop.permute.xlu0 %1647
      %1649 = vrot.lane.b32.xlu0 %v1359, 96
      %v1650 = vpop.permute.xlu0 %1649
      %1651 = vrot.lane.b32.xlu0 %v1360, 96
      %v1652 = vpop.permute.xlu0 %1651
      %1653 = vrot.lane.b32.xlu0 %v1361, 96
      %v1654 = vpop.permute.xlu0 %1653
      %1655 = vrot.lane.b32.xlu0 %v1362, 96
      %v1656 = vpop.permute.xlu0 %1655
      %1657 = vrot.lane.b32.xlu0 %v1363, 96
      %v1658 = vpop.permute.xlu0 %1657
      %v1668 = vmul.f32 %v1595, %v1642
      %v1669 = vmul.f32 %v1598, %v1644
      %v1670 = vmul.f32 %v1603, %v1646
      %v1671 = vmul.f32 %v1606, %v1648
      %v1672 = vmul.f32 %v1611, %v1650
      %v1673 = vmul.f32 %v1614, %v1652
      %v1674 = vmul.f32 %v1619, %v1654
      %v1675 = vmul.f32 %v1622, %v1656
      %v1676 = vmul.f32 %v1627, %v1658
      %v1677 = vsel %vm553, %v1668, 0.0
      %v1678 = vsel %vm553, %v1669, 0.0
      %v1679 = vadd.f32 %v1677, %v1678
      %v1680 = vsel %vm553, %v1670, 0.0
      %v1681 = vadd.f32 %v1679, %v1680
      %v1682 = vsel %vm553, %v1671, 0.0
      %v1683 = vadd.f32 %v1681, %v1682
      %v1684 = vsel %vm553, %v1672, 0.0
      %v1685 = vadd.f32 %v1683, %v1684
      %v1686 = vsel %vm553, %v1673, 0.0
      %v1687 = vadd.f32 %v1685, %v1686
      %v1688 = vsel %vm553, %v1674, 0.0
      %v1689 = vadd.f32 %v1687, %v1688
      %v1690 = vsel %vm553, %v1675, 0.0
      %v1691 = vadd.f32 %v1689, %v1690
      %v1692 = vsel %vm553, %v1676, 0.0
      %v1693 = vadd.f32 %v1691, %v1692
      %v1694 = vld [vmem:[%s3 + $0x60] sm:$0xf]
      %v1695 = vld [vmem:[%s3 + $0x64] sm:$0xf]
      %v1696 = vld [vmem:[%s3 + $0x68] sm:$0xf]
      %v1697 = vld [vmem:[%s3 + $0x6c] sm:$0xf]
      %v1698 = vpack.c.bf16 %v1693, %v1693
      %v1703 = vunpack.c.l.b16 %v1694
      %v1704 = vunpack.c.l.b16 %v1695
      %v1705 = vunpack.c.l.b16 %v1696
      %v1706 = vunpack.c.l.b16 %v1697
      %v1707 = vpack.c.b16 %v1704, %v1703
      %v1708 = vpack.c.b16 %v1706, %v1705
      %v1712 = vsel %vm553, %v1698, 0
      %1714 = vmatprep.subr.bf16.mxu0 0
      %1715 = vmatpush1.bf16.msra.mxu0 %v1707
      %1716 = vmatprep.subr.bf16.mxu0 0
      %1717 = vmatpush1.bf16.msra.mxu0 %v1708
      %1718 = vmatprep.subr.bf16.mxu0 0
      %1719 = vmatpush1.bf16.msra.mxu0 0
      %1720 = vmatprep.subr.bf16.mxu0 0
      %1721 = vmatpush1.bf16.msra.mxu0 0
      %1722 = vmatprep.subr.bf16.mxu0 0
      %1723 = vmatpush1.bf16.msra.mxu0 0
      %1724 = vmatprep.subr.bf16.mxu0 0
      %1725 = vmatpush1.bf16.msra.mxu0 0
      %1726 = vmatprep.subr.bf16.mxu0 0
      %1727 = vmatpush1.bf16.msra.mxu0 0
      %1728 = vmatprep.subr.bf16.mxu0 0
      %1729 = vmatpush1.bf16.msra.mxu0 0
      %1730 = vmatprep.subr.bf16.mxu0 0
      %1731 = vmatpush1.bf16.msra.mxu0 0
      %1732 = vmatprep.subr.bf16.mxu0 0
      %1733 = vmatpush1.bf16.msra.mxu0 0
      %1734 = vmatprep.subr.bf16.mxu0 0
      %1735 = vmatpush1.bf16.msra.mxu0 0
      %1736 = vmatprep.subr.bf16.mxu0 0
      %1737 = vmatpush1.bf16.msra.mxu0 0
      %1738 = vmatprep.subr.bf16.mxu0 0
      %1739 = vmatpush1.bf16.msra.mxu0 0
      %1740 = vmatprep.subr.bf16.mxu0 0
      %1741 = vmatpush1.bf16.msra.mxu0 0
      %1742 = vmatprep.subr.bf16.mxu0 0
      %1743 = vmatpush1.bf16.msra.mxu0 0
      %1744 = vmatprep.subr.bf16.mxu0 0
      %1745 = vmatpush1.bf16.msra.mxu0 0
      %1746 = vmatprep.mubr.bf16.mxu0 0
      %1747 = vmatmul.mubr.bf16.gmra.mrb[0].mxu0 %v1712
      %v1748 = vpop.f32.mrb[0].mxu0
      %v1749 = vadd.f32 0.0, %v1748
      %v1750 = vpop.f32.mrb[0].mxu0
      %v1751 = vpop.f32.mrb[0].mxu0
      %v1752 = vpop.f32.mrb[0].mxu0
      %1753 = vdwg.mxu0
      %v1754 = vadd.f32 %v1169, %v1749
      %v1755 = vld [vmem:[%s4 + $0x3] sm:$0x1]
      %v1756 = vlaneseq
      %v1757 = vshrl.u32 %v1756, 7
      %v1758 = vsub.s32 0, %v1757
      %v1759 = vrot.slane %v1755, %v1758
      %v1760 = vadd.f32 %v1754, %v1759
      %v1761 = vmax.f32 %v1760, 0.0
      %v1762 = vld [vmem:[%s3 + $0x70] sm:$0xf]
      %v1763 = vld [vmem:[%s3 + $0x74] sm:$0xf]
      %v1764 = vld [vmem:[%s3 + $0x78] sm:$0xf]
      %v1765 = vld [vmem:[%s3 + $0x7c] sm:$0xf]
      %v1766 = vpack.c.bf16 %v1761, %v1761
      %v1767 = vld [vmem:[%s4 + $0x4] sm:$0x1]
      %v1768 = vlaneseq
      %v1769 = vshrl.u32 %v1768, 7
      %v1770 = vsub.s32 0, %v1769
      %v1771 = vrot.slane %v1767, %v1770
      %v1776 = vunpack.c.l.b16 %v1762
      %v1777 = vunpack.c.l.b16 %v1763
      %v1778 = vunpack.c.l.b16 %v1764
      %v1779 = vunpack.c.l.b16 %v1765
      %v1780 = vpack.c.b16 %v1777, %v1776
      %v1781 = vpack.c.b16 %v1779, %v1778
      %v1785 = vsel %vm553, %v1766, 0
      %1787 = vmatprep.subr.bf16.mxu0 0
      %1788 = vmatpush1.bf16.msra.mxu0 %v1780
      %1789 = vmatprep.subr.bf16.mxu0 0
      %1790 = vmatpush1.bf16.msra.mxu0 %v1781
      %1791 = vmatprep.subr.bf16.mxu0 0
      %1792 = vmatpush1.bf16.msra.mxu0 0
      %1793 = vmatprep.subr.bf16.mxu0 0
      %1794 = vmatpush1.bf16.msra.mxu0 0
      %1795 = vmatprep.subr.bf16.mxu0 0
      %1796 = vmatpush1.bf16.msra.mxu0 0
      %1797 = vmatprep.subr.bf16.mxu0 0
      %1798 = vmatpush1.bf16.msra.mxu0 0
      %1799 = vmatprep.subr.bf16.mxu0 0
      %1800 = vmatpush1.bf16.msra.mxu0 0
      %1801 = vmatprep.subr.bf16.mxu0 0
      %1802 = vmatpush1.bf16.msra.mxu0 0
      %1803 = vmatprep.subr.bf16.mxu0 0
      %1804 = vmatpush1.bf16.msra.mxu0 0
      %1805 = vmatprep.subr.bf16.mxu0 0
      %1806 = vmatpush1.bf16.msra.mxu0 0
      %1807 = vmatprep.subr.bf16.mxu0 0
      %1808 = vmatpush1.bf16.msra.mxu0 0
      %1809 = vmatprep.subr.bf16.mxu0 0
      %1810 = vmatpush1.bf16.msra.mxu0 0
      %1811 = vmatprep.subr.bf16.mxu0 0
      %1812 = vmatpush1.bf16.msra.mxu0 0
      %1813 = vmatprep.subr.bf16.mxu0 0
      %1814 = vmatpush1.bf16.msra.mxu0 0
      %1815 = vmatprep.subr.bf16.mxu0 0
      %1816 = vmatpush1.bf16.msra.mxu0 0
      %1817 = vmatprep.subr.bf16.mxu0 0
      %1818 = vmatpush1.bf16.msra.mxu0 0
      %1819 = vmatprep.mubr.bf16.mxu0 0
      %1820 = vmatmul.mubr.bf16.gmra.mrb[0].mxu0 %v1785
      %v1821 = vpop.f32.mrb[0].mxu0
      %v1822 = vadd.f32 %v1771, %v1821
      %v1823 = vpop.f32.mrb[0].mxu0
      %v1824 = vpop.f32.mrb[0].mxu0
      %v1825 = vpop.f32.mrb[0].mxu0
      %1826 = vdwg.mxu0
      %v1827 = vmax.f32 %v1822, 0.0
      %v1828 = vld [vmem:[%s3 + $0x80] sm:$0xf]
      %v1829 = vld [vmem:[%s3 + $0x84] sm:$0xf]
      %v1830 = vld [vmem:[%s3 + $0x88] sm:$0xf]
      %v1831 = vld [vmem:[%s3 + $0x8c] sm:$0xf]
      %v1832 = vpack.c.bf16 %v1827, %v1827
      %v1833 = vld [vmem:[%s4 + $0x5] sm:$0x1]
      %v1834 = vlaneseq
      %v1835 = vshrl.u32 %v1834, 7
      %v1836 = vsub.s32 0, %v1835
      %v1837 = vrot.slane %v1833, %v1836
      %v1842 = vunpack.c.l.b16 %v1828
      %v1843 = vunpack.c.l.b16 %v1829
      %v1844 = vunpack.c.l.b16 %v1830
      %v1845 = vunpack.c.l.b16 %v1831
      %v1846 = vpack.c.b16 %v1843, %v1842
      %v1847 = vpack.c.b16 %v1845, %v1844
      %v1851 = vsel %vm553, %v1832, 0
      %1853 = vmatprep.subr.bf16.mxu0 0
      %1854 = vmatpush1.bf16.msra.mxu0 %v1846
      %1855 = vmatprep.subr.bf16.mxu0 0
      %1856 = vmatpush1.bf16.msra.mxu0 %v1847
      %1857 = vmatprep.subr.bf16.mxu0 0
      %1858 = vmatpush1.bf16.msra.mxu0 0
      %1859 = vmatprep.subr.bf16.mxu0 0
      %1860 = vmatpush1.bf16.msra.mxu0 0
      %1861 = vmatprep.subr.bf16.mxu0 0
      %1862 = vmatpush1.bf16.msra.mxu0 0
      %1863 = vmatprep.subr.bf16.mxu0 0
      %1864 = vmatpush1.bf16.msra.mxu0 0
      %1865 = vmatprep.subr.bf16.mxu0 0
      %1866 = vmatpush1.bf16.msra.mxu0 0
      %1867 = vmatprep.subr.bf16.mxu0 0
      %1868 = vmatpush1.bf16.msra.mxu0 0
      %1869 = vmatprep.subr.bf16.mxu0 0
      %1870 = vmatpush1.bf16.msra.mxu0 0
      %1871 = vmatprep.subr.bf16.mxu0 0
      %1872 = vmatpush1.bf16.msra.mxu0 0
      %1873 = vmatprep.subr.bf16.mxu0 0
      %1874 = vmatpush1.bf16.msra.mxu0 0
      %1875 = vmatprep.subr.bf16.mxu0 0
      %1876 = vmatpush1.bf16.msra.mxu0 0
      %1877 = vmatprep.subr.bf16.mxu0 0
      %1878 = vmatpush1.bf16.msra.mxu0 0
      %1879 = vmatprep.subr.bf16.mxu0 0
      %1880 = vmatpush1.bf16.msra.mxu0 0
      %1881 = vmatprep.subr.bf16.mxu0 0
      %1882 = vmatpush1.bf16.msra.mxu0 0
      %1883 = vmatprep.subr.bf16.mxu0 0
      %1884 = vmatpush1.bf16.msra.mxu0 0
      %1885 = vmatprep.mubr.bf16.mxu0 0
      %1886 = vmatmul.mubr.bf16.gmra.mrb[0].mxu0 %v1851
      %v1887 = vpop.f32.mrb[0].mxu0
      %v1888 = vadd.f32 %v1837, %v1887
      %v1889 = vpop.f32.mrb[0].mxu0
      %v1890 = vpop.f32.mrb[0].mxu0
      %v1891 = vpop.f32.mrb[0].mxu0
      %1892 = vdwg.mxu0
      %v1893 = vld [vmem:[%s3 + $0x90] sm:$0xf]
      %v1894 = vld [vmem:[%s3 + $0x94] sm:$0xf]
      %v1895 = vld [vmem:[%s3 + $0x98] sm:$0xf]
      %v1896 = vld [vmem:[%s3 + $0x9c] sm:$0xf]
      %v1897 = vpack.c.bf16 %v317, %v317
      %v1898 = vld [vmem:[%s4 + $0x6] sm:$0x1]
      %v1899 = vlaneseq
      %v1900 = vshrl.u32 %v1899, 7
      %v1901 = vsub.s32 0, %v1900
      %v1902 = vrot.slane %v1898, %v1901
      %v1907 = vunpack.c.l.b16 %v1893
      %v1908 = vunpack.c.l.b16 %v1894
      %v1909 = vunpack.c.l.b16 %v1895
      %v1910 = vunpack.c.l.b16 %v1896
      %v1911 = vpack.c.b16 %v1908, %v1907
      %v1912 = vpack.c.b16 %v1910, %v1909
      %v1916 = vsel %vm553, %v1897, 0
      %1918 = vmatprep.subr.bf16.mxu0 0
      %1919 = vmatpush1.bf16.msra.mxu0 %v1911
      %1920 = vmatprep.subr.bf16.mxu0 0
      %1921 = vmatpush1.bf16.msra.mxu0 %v1912
      %1922 = vmatprep.subr.bf16.mxu0 0
      %1923 = vmatpush1.bf16.msra.mxu0 0
      %1924 = vmatprep.subr.bf16.mxu0 0
      %1925 = vmatpush1.bf16.msra.mxu0 0
      %1926 = vmatprep.subr.bf16.mxu0 0
      %1927 = vmatpush1.bf16.msra.mxu0 0
      %1928 = vmatprep.subr.bf16.mxu0 0
      %1929 = vmatpush1.bf16.msra.mxu0 0
      %1930 = vmatprep.subr.bf16.mxu0 0
      %1931 = vmatpush1.bf16.msra.mxu0 0
      %1932 = vmatprep.subr.bf16.mxu0 0
      %1933 = vmatpush1.bf16.msra.mxu0 0
      %1934 = vmatprep.subr.bf16.mxu0 0
      %1935 = vmatpush1.bf16.msra.mxu0 0
      %1936 = vmatprep.subr.bf16.mxu0 0
      %1937 = vmatpush1.bf16.msra.mxu0 0
      %1938 = vmatprep.subr.bf16.mxu0 0
      %1939 = vmatpush1.bf16.msra.mxu0 0
      %1940 = vmatprep.subr.bf16.mxu0 0
      %1941 = vmatpush1.bf16.msra.mxu0 0
      %1942 = vmatprep.subr.bf16.mxu0 0
      %1943 = vmatpush1.bf16.msra.mxu0 0
      %1944 = vmatprep.subr.bf16.mxu0 0
      %1945 = vmatpush1.bf16.msra.mxu0 0
      %1946 = vmatprep.subr.bf16.mxu0 0
      %1947 = vmatpush1.bf16.msra.mxu0 0
      %1948 = vmatprep.subr.bf16.mxu0 0
      %1949 = vmatpush1.bf16.msra.mxu0 0
      %1950 = vmatprep.mubr.bf16.mxu0 0
      %1951 = vmatmul.mubr.bf16.gmra.mrb[0].mxu0 %v1916
      %v1952 = vpop.f32.mrb[0].mxu0
      %v1953 = vadd.f32 %v1902, %v1952
      %v1954 = vpop.f32.mrb[0].mxu0
      %v1955 = vpop.f32.mrb[0].mxu0
      %v1956 = vpop.f32.mrb[0].mxu0
      %1957 = vdwg.mxu0
      %v1958 = vadd.f32 %v1888, %v1953
      %v1959 = vxor.u32 %v1958, 2147483648
      %v1960 = vmul.f32 %v1959, 1.442695
      %v1961 = vpow.pop %v1960
      %v1962 = vadd.f32 %v1961, 1.0
      %v1963 = vrcp.pop %v1962
      %v1964 = vmul.f32 1.0, %v1963
      %1966 = vrot.lane.b32.xlu0 %v1953, 64
      %v1967 = vpop.permute.xlu0 %1966
      %v1969 = vmul.f32 %v1964, %v1967
      %1971 = vrot.lane.b32.xlu0 %v1969, 64
      %v1972 = vpop.permute.xlu0 %1971
      %v1974 = vadd.f32 %v1888, %v1972
      %v1975 = vtanh.pop %v1974
      %v1976 = vsub.f32 1.0, %v1964
      %1978 = vrot.lane.b32.xlu0 %v1975, 96
      %v1979 = vpop.permute.xlu0 %1978
      %v1981 = vmul.f32 %v1976, %v1979
      %1983 = vrot.lane.b32.xlu0 %v317, 32
      %v1984 = vpop.permute.xlu0 %1983
      %v1986 = vmul.f32 %v1964, %v1984
      %v1987 = vadd.f32 %v1981, %v1986
      %1989 = vrot.lane.b32.xlu0 %v1987, 96
      %v1990 = vpop.permute.xlu0 %1989
      %1992 = vst.msk [vmem:[#allocation2] sm:$0xff] %vm553, %v1990
      %v1993 = vld [vmem:[%s4 + $0x8] sm:$0xff]
      %v1994 = vld [vmem:[%s4 + $0x10] sm:$0xff]
      %v1995 = vld [vmem:[%s4 + $0x18] sm:$0xff]
      %v1996 = vld [vmem:[%s4 + $0x20] sm:$0xff]
      %v1997 = vld [vmem:[%s4 + $0x7] sm:$0x1]
      %v1998 = vlaneseq
      %v1999 = vshrl.u32 %v1998, 7
      %v2000 = vsub.s32 0, %v1999
      %v2001 = vrot.slane %v1997, %v2000
      %v2002 = vsel %vm553, %v1990, 0
      %2004 = vmatprep.subr.mxu0 0.0
      %2005 = vmatpush1.msra.mxu0 %v1993
      %2006 = vmatprep.subr.mxu0 0.0
      %2007 = vmatpush1.msra.mxu0 %v1994
      %2008 = vmatprep.subr.mxu0 0.0
      %2009 = vmatpush1.msra.mxu0 %v1995
      %2010 = vmatprep.subr.mxu0 0.0
      %2011 = vmatpush1.msra.mxu0 %v1996
      %2012 = vmatprep.subr.mxu0 0.0
      %2013 = vmatpush1.msra.mxu0 0.0
      %2014 = vmatprep.subr.mxu0 0.0
      %2015 = vmatpush1.msra.mxu0 0.0
      %2016 = vmatprep.subr.mxu0 0.0
      %2017 = vmatpush1.msra.mxu0 0.0
      %2018 = vmatprep.subr.mxu0 0.0
      %2019 = vmatpush1.msra.mxu0 0.0
      %2020 = vmatprep.subr.mxu0 0.0
      %2021 = vmatpush1.msra.mxu0 0.0
      %2022 = vmatprep.subr.mxu0 0.0
      %2023 = vmatpush1.msra.mxu0 0.0
      %2024 = vmatprep.subr.mxu0 0.0
      %2025 = vmatpush1.msra.mxu0 0.0
      %2026 = vmatprep.subr.mxu0 0.0
      %2027 = vmatpush1.msra.mxu0 0.0
      %2028 = vmatprep.subr.mxu0 0.0
      %2029 = vmatpush1.msra.mxu0 0.0
      %2030 = vmatprep.subr.mxu0 0.0
      %2031 = vmatpush1.msra.mxu0 0.0
      %2032 = vmatprep.subr.mxu0 0.0
      %2033 = vmatpush1.msra.mxu0 0.0
      %2034 = vmatprep.subr.mxu0 0.0
      %2035 = vmatpush1.msra.mxu0 0.0
      %2036 = vmatprep.subr.mxu0 0.0
      %2037 = vmatpush1.msra.mxu0 0.0
      %2038 = vmatprep.subr.mxu0 0.0
      %2039 = vmatpush1.msra.mxu0 0.0
      %2040 = vmatprep.subr.mxu0 0.0
      %2041 = vmatpush1.msra.mxu0 0.0
      %2042 = vmatprep.subr.mxu0 0.0
      %2043 = vmatpush1.msra.mxu0 0.0
      %2044 = vmatprep.subr.mxu0 0.0
      %2045 = vmatpush1.msra.mxu0 0.0
      %2046 = vmatprep.subr.mxu0 0.0
      %2047 = vmatpush1.msra.mxu0 0.0
      %2048 = vmatprep.subr.mxu0 0.0
      %2049 = vmatpush1.msra.mxu0 0.0
      %2050 = vmatprep.subr.mxu0 0.0
      %2051 = vmatpush1.msra.mxu0 0.0
      %2052 = vmatprep.subr.mxu0 0.0
      %2053 = vmatpush1.msra.mxu0 0.0
      %2054 = vmatprep.subr.mxu0 0.0
      %2055 = vmatpush1.msra.mxu0 0.0
      %2056 = vmatprep.subr.mxu0 0.0
      %2057 = vmatpush1.msra.mxu0 0.0
      %2058 = vmatprep.subr.mxu0 0.0
      %2059 = vmatpush1.msra.mxu0 0.0
      %2060 = vmatprep.subr.mxu0 0.0
      %2061 = vmatpush1.msra.mxu0 0.0
      %2062 = vmatprep.subr.mxu0 0.0
      %2063 = vmatpush1.msra.mxu0 0.0
      %2064 = vmatprep.subr.mxu0 0.0
      %2065 = vmatpush1.msra.mxu0 0.0
      %2066 = vmatprep.subr.mxu0 0.0
      %2067 = vmatpush1.msra.mxu0 0.0
      %2068 = vmatprep.mubr.f32.mxu0 0.0
      %2069 = vmatmul.mubr.f32.gmra.mrb[0].mxu0 %v2002
      %v2070 = vpop.f32.mrb[0].mxu0
      %v2071 = vadd.f32 %v2001, %v2070
      %v2072 = vpop.f32.mrb[0].mxu0
      %2073 = vdwg.mxu0
      %2074 = vst [vmem:[%s298] sm:$0xff] %v2071
      %p2075 = scmp.lt.s32.totalorder %s21, 7
      %s2076 = scalar_select %p2075, %s21, 7
      %p2077 = scmp.lt.s32.totalorder %s20, 0
      %s2078 = scalar_select %p2077, %s20, 0
      %s2079 = sadd.s32 %s2078, %s2076
      %s2080 = smul.addr %s2079, 8
      %s2081 = scalar_lea.vmem %s5, %s2080
      // Predicated region
      $region45: #{multi_att_rnn_agent_rollout.1} parent=39 // pred_check
        %p2082 = pneg %p172
      $region46: #{multi_att_rnn_agent_rollout.1} parent=39 // pred_check_branch
        %2084 = sbr.rel (%p2082) target = $region48
      $region47: #{multi_att_rnn_agent_rollout.1} parent=39 // pred_region
        _
      $region48: #{multi_att_rnn_agent_rollout.1} parent=39 // pred_fallthru
        _
    $region40: #{multi_att_rnn_agent_rollout.1} parent=5 // pred_fallthru
      _
    %p2085 = scmp.le.s32.totalorder 2, %s11
    // Predicated region
    $region49: #{multi_att_rnn_agent_rollout.1} parent=5 // pred_check
      %p2086 = pneg %p2085
    $region50: #{multi_att_rnn_agent_rollout.1} parent=5 // pred_check_branch
      %2088 = sbr.rel (%p2086) target = $region52
    $region51: #{multi_att_rnn_agent_rollout.1} parent=5 // pred_region
      %s2089 = ssub.s32 %s11, 2
      // Predicated region
      $region53: #{multi_att_rnn_agent_rollout.1} parent=51 // pred_check
        %p2090 = pneg %p178
      $region54: #{multi_att_rnn_agent_rollout.1} parent=51 // pred_check_branch
        %2092 = sbr.rel (%p2090) target = $region56
      $region55: #{multi_att_rnn_agent_rollout.1} parent=51 // pred_region
        %p2093 = scmp.lt.s32.totalorder %s23, 7
        %s2094 = scalar_select %p2093, %s23, 7
        %p2095 = scmp.lt.s32.totalorder %s22, 0
        %s2096 = scalar_select %p2095, %s22, 0
        %s2097 = sadd.s32 %s2096, %s2094
        %s2098 = smul.addr %s2097, 8
        %s2099 = scalar_lea.vmem %s5, %s2098
      $region56: #{multi_att_rnn_agent_rollout.1} parent=51 // pred_fallthru
        _
    $region52: #{multi_att_rnn_agent_rollout.1} parent=5 // pred_fallthru
      _
  $region6: #{multi_att_rnn_agent_rollout.1} parent=0 // loop_footer
    %s15 = sadd.s32 1, %s11
  $region7: #{multi_att_rnn_agent_rollout.1} parent=0 // loop_footer_branch
    %10 = sbr.rel target = $region3
  $region8: #{multi_att_rnn_agent_rollout.1} parent=0 // loop_exit
    _

</llo_original>
